<compile_context>
chip_gen: v5e
topology: v5e:2x2
jax: 0.10.0
libtpu: 0.0.40
codegen_flags: <defaults>
</compile_context>

<pallas_src>
import functools

import jax
import jax.numpy as jnp
import numpy as np
from jax.experimental import pallas as pl
from jax.experimental.pallas import tpu as pltpu

_NEG_BIG = -1e30  # finite "-inf" for masking padded source positions


def _round_up(x, m):
    return (x + m - 1) // m * m


def luong_attention_kernel(ctx_ref, h_ref, x_ref,
                           w_in_ref, b_in_ref,
                           w_c_ref, w_h_ref, w_x_ref, b_out_ref,
                           out_ref, weights_ref,
                           gamma_sc, m_sc, l_sc, acc_sc,
                           *, ts, s_valid):
    s_idx = pl.program_id(1)
    n_s = pl.num_programs(1)

    # ---- per-batch-tile init (first S step) --------------------------------
    @pl.when(s_idx == 0)
    def _init():
        # gamma_h = linear_in(h): one MXU matmul per batch tile, reused over S.
        gamma_sc[...] = (
            jnp.dot(h_ref[...], w_in_ref[...],
                    preferred_element_type=jnp.float32)
            + b_in_ref[...])
        m_sc[...] = jnp.full_like(m_sc, -jnp.inf)
        l_sc[...] = jnp.zeros_like(l_sc)
        acc_sc[...] = jnp.zeros_like(acc_sc)

    ctx = ctx_ref[...]                                   # (tb, ts, Hp)
    gamma = gamma_sc[...]                                # (tb, Hp)

    # scores = <context, gamma_h> over H -- VPU mul + lane reduce (off the MXU)
    scores = jnp.sum(ctx * gamma[:, None, :], axis=-1)   # (tb, ts)

    # mask padded source positions
    col = s_idx * ts + jax.lax.broadcasted_iota(jnp.int32, scores.shape, 1)
    scores = jnp.where(col < s_valid, scores, _NEG_BIG)

    # stash raw scores in the S-resident weights block; normalized at the end
    start = pl.multiple_of(s_idx * ts, ts)
    weights_ref[:, pl.ds(start, ts)] = scores

    # ---- online softmax accumulation ---------------------------------------
    m_prev = m_sc[...]
    m_new = jnp.maximum(m_prev, jnp.max(scores, axis=-1, keepdims=True))
    alpha = jnp.exp(m_prev - m_new)
    p = jnp.exp(scores - m_new)                          # (tb, ts)
    l_sc[...] = alpha * l_sc[...] + jnp.sum(p, axis=-1, keepdims=True)
    # c_t partial: sum_s p * ctx -- VPU mul + sublane reduce (off the MXU)
    acc_sc[...] = alpha * acc_sc[...] + jnp.sum(p[:, :, None] * ctx, axis=1)
    m_sc[...] = m_new

    # ---- finalize (last S step) --------------------------------------------
    @pl.when(s_idx == n_s - 1)
    def _finalize():
        inv_l = pl.reciprocal(l_sc[...])                 # exact; EUP slot
        weights_ref[...] = jnp.exp(weights_ref[...] - m_sc[...]) * inv_l
        c_t = acc_sc[...] * inv_l                        # (tb, Hp)
        # output = tanh(Linear(cat([c_t, h, x], 1))), with the weight
        # pre-split (and pre-transposed) along its input dim in the wrapper.
        pre = (jnp.dot(c_t, w_c_ref[...], preferred_element_type=jnp.float32)
               + jnp.dot(h_ref[...], w_h_ref[...],
                         preferred_element_type=jnp.float32)
               + jnp.dot(x_ref[...], w_x_ref[...],
                         preferred_element_type=jnp.float32)
               + b_out_ref[...])
        out_ref[...] = jnp.tanh(pre)


def luong_attention(context, h, x, w_in, b_in, w_out, b_out,
                    *, batch_tile=8, seq_tile=512):
    """context: (B,S,H), h: (B,H), x: (B,E), w_in: (H,H), b_in: (H,),
       w_out: (H, 2H+E), b_out: (H,) [PyTorch (out,in) convention].
       Returns (output (B,H), weights (B,S))."""
    B, S, H = context.shape
    E = x.shape[1]
    f32 = jnp.float32

    # ---- lane/sublane aligned padded sizes ---------------------------------
    Hp = _round_up(H, 128)
    Ep = _round_up(E, 128)
    tb = batch_tile
    Bp = _round_up(B, tb)
    ts = min(seq_tile, _round_up(S, 128))   # lane-dense S tile
    Sp = _round_up(S, ts)

    # ---- glue: pad inputs + pre-transpose / pre-split weights --------------
    ctx_p = jnp.pad(context.astype(f32),
                    ((0, Bp - B), (0, Sp - S), (0, Hp - H)))
    h_p = jnp.pad(h.astype(f32), ((0, Bp - B), (0, Hp - H)))
    x_p = jnp.pad(x.astype(f32), ((0, Bp - B), (0, Ep - E)))

    w_in_t = jnp.pad(w_in.astype(f32).T, ((0, Hp - H), (0, Hp - H)))
    b_in_p = jnp.pad(b_in.astype(f32).reshape(1, H), ((0, 0), (0, Hp - H)))
    # linear_out weight split along input features (cat order: c_t, h, x)
    w_c_t = jnp.pad(w_out[:, :H].astype(f32).T, ((0, Hp - H), (0, Hp - H)))
    w_h_t = jnp.pad(w_out[:, H:2 * H].astype(f32).T, ((0, Hp - H), (0, Hp - H)))
    w_x_t = jnp.pad(w_out[:, 2 * H:].astype(f32).T, ((0, Ep - E), (0, Hp - H)))
    b_out_p = jnp.pad(b_out.astype(f32).reshape(1, H), ((0, 0), (0, Hp - H)))

    grid = (Bp // tb, Sp // ts)
    kernel = functools.partial(luong_attention_kernel, ts=ts, s_valid=S)

    flops = B * (2 * H * H + 4 * S * H + 2 * H * (2 * H + E))
    bytes_accessed = 4 * (Bp * Sp * Hp + Bp * Sp + 3 * Bp * Hp
                          + 3 * Hp * Hp + Ep * Hp)
    cost = pl.CostEstimate(flops=flops,
                           transcendentals=B * S + B * H,
                           bytes_accessed=bytes_accessed)

    out_p, weights_p = pl.pallas_call(
        kernel,
        out_shape=(jax.ShapeDtypeStruct((Bp, Hp), f32),
                   jax.ShapeDtypeStruct((Bp, Sp), f32)),
        grid_spec=pltpu.PrefetchScalarGridSpec(
            num_scalar_prefetch=0,
            grid=grid,
            in_specs=[
                pl.BlockSpec((tb, ts, Hp), lambda b, s: (b, s, 0)),   # context
                pl.BlockSpec((tb, Hp), lambda b, s: (b, 0)),          # h
                pl.BlockSpec((tb, Ep), lambda b, s: (b, 0)),          # x
                pl.BlockSpec((Hp, Hp), lambda b, s: (0, 0)),          # W_in^T
                pl.BlockSpec((1, Hp), lambda b, s: (0, 0)),           # b_in
                pl.BlockSpec((Hp, Hp), lambda b, s: (0, 0)),          # W_c^T
                pl.BlockSpec((Hp, Hp), lambda b, s: (0, 0)),          # W_h^T
                pl.BlockSpec((Ep, Hp), lambda b, s: (0, 0)),          # W_x^T
                pl.BlockSpec((1, Hp), lambda b, s: (0, 0)),           # b_out
            ],
            out_specs=(
                pl.BlockSpec((tb, Hp), lambda b, s: (b, 0)),          # output
                pl.BlockSpec((tb, Sp), lambda b, s: (b, 0)),          # weights
            ),
            scratch_shapes=[
                pltpu.VMEM((tb, Hp), f32),   # gamma_h (reused across S steps)
                pltpu.VMEM((tb, 1), f32),    # running max
                pltpu.VMEM((tb, 1), f32),    # running sum
                pltpu.VMEM((tb, Hp), f32),   # c_t accumulator
            ]),
        compiler_params=pltpu.CompilerParams(
            dimension_semantics=("parallel", "arbitrary"),
            # Tiles are a few MiB double-buffered; 32 MiB is safe on v5e/v6e
            # (128 MiB physical) and within v7x's 64 MiB physical VMEM.
            vmem_limit_bytes=32 * 1024 * 1024),
        cost_estimate=cost,
    )(ctx_p, h_p, x_p, w_in_t, b_in_p, w_c_t, w_h_t, w_x_t, b_out_p)

    return out_p[:B, :H], weights_p[:B, :S]


def reference(context, h, x, w_in, b_in, w_out, b_out):
    gamma_h = h @ w_in.T + b_in
    scores = jnp.einsum('bsk,bk->bs', context, gamma_h)
    w = jax.nn.softmax(scores, axis=1)
    c_t = jnp.einsum('bs,bsk->bk', w, context)
    cat = jnp.concatenate([c_t, h, x], axis=1)
    out = jnp.tanh(cat @ w_out.T + b_out)
    return out, w


if __name__ == "__main__":
    B, S, H, E = 2, 8, 32, 32

    key = jax.random.PRNGKey(0)
    k_ctx, k_h, k_x, k_win, k_bin, k_wout, k_bout = jax.random.split(key, 7)

    # deterministic synthetic parameters (shapes from LuongAttention.__init__)
    w_in = 0.1 * jax.random.normal(k_win, (H, H), jnp.float32)            # linear_in
    b_in = 0.1 * jax.random.normal(k_bin, (H,), jnp.float32)
    w_out = 0.1 * jax.random.normal(k_wout, (H, 2 * H + E), jnp.float32)  # linear_out[0]
    b_out = 0.1 * jax.random.normal(k_bout, (H,), jnp.float32)

    # inputs: context as stored after init_context (B, S, H); h (B, H); x (B, E)
    context = jax.random.normal(k_ctx, (B, S, H), jnp.float32)
    h = jax.random.normal(k_h, (B, H), jnp.float32)
    x = jax.random.normal(k_x, (B, E), jnp.float32)

    out, weights = luong_attention(context, h, x, w_in, b_in, w_out, b_out)
    out, weights = jax.block_until_ready((out, weights))

    out_ref, w_ref = reference(context, h, x, w_in, b_in, w_out, b_out)
    np.testing.assert_allclose(np.asarray(out), np.asarray(out_ref),
                               rtol=1e-5, atol=1e-5)
    np.testing.assert_allclose(np.asarray(weights), np.asarray(w_ref),
                               rtol=1e-5, atol=1e-5)

    print("KERNEL_OK")
</pallas_src>

<mosaic_0001>
module attributes {stable_mosaic.version = 11 : i64} {
  func.func @luong_attention_kernel(%arg0: i32, %arg1: i32, %arg2: memref<8x128x128xf32, #tpu.memory_space<vmem>>, %arg3: memref<8x128xf32, #tpu.memory_space<vmem>>, %arg4: memref<8x128xf32, #tpu.memory_space<vmem>>, %arg5: memref<128x128xf32, #tpu.memory_space<vmem>>, %arg6: memref<1x128xf32, #tpu.memory_space<vmem>>, %arg7: memref<128x128xf32, #tpu.memory_space<vmem>>, %arg8: memref<128x128xf32, #tpu.memory_space<vmem>>, %arg9: memref<128x128xf32, #tpu.memory_space<vmem>>, %arg10: memref<1x128xf32, #tpu.memory_space<vmem>>, %arg11: memref<8x128xf32, #tpu.memory_space<vmem>>, %arg12: memref<8x128xf32, #tpu.memory_space<vmem>>, %arg13: memref<8x128xf32, #tpu.memory_space<vmem>>, %arg14: memref<8x1xf32, #tpu.memory_space<vmem>>, %arg15: memref<8x1xf32, #tpu.memory_space<vmem>>, %arg16: memref<8x128xf32, #tpu.memory_space<vmem>>) attributes {dimension_semantics = [#tpu.dimension_semantics<parallel>, #tpu.dimension_semantics<arbitrary>], iteration_bounds = array<i64: 1, 1>, scalar_prefetch = 0 : i64, scratch_operands = 4 : i64, tpu.core_type = #tpu.core_type<tc>, window_params = [{transform_indices = @transform_0, window_bounds = array<i64: 8, 128, 128>}, {transform_indices = @transform_1, window_bounds = array<i64: 8, 128>}, {transform_indices = @transform_2, window_bounds = array<i64: 8, 128>}, {pipeline_mode = #tpu.pipeline_mode<synchronous>, transform_indices = @transform_3, window_bounds = array<i64: 128, 128>}, {pipeline_mode = #tpu.pipeline_mode<synchronous>, transform_indices = @transform_4, window_bounds = array<i64: 1, 128>}, {pipeline_mode = #tpu.pipeline_mode<synchronous>, transform_indices = @transform_5, window_bounds = array<i64: 128, 128>}, {pipeline_mode = #tpu.pipeline_mode<synchronous>, transform_indices = @transform_6, window_bounds = array<i64: 128, 128>}, {pipeline_mode = #tpu.pipeline_mode<synchronous>, transform_indices = @transform_7, window_bounds = array<i64: 128, 128>}, {pipeline_mode = #tpu.pipeline_mode<synchronous>, transform_indices = @transform_8, window_bounds = array<i64: 1, 128>}, {transform_indices = @transform_9, window_bounds = array<i64: 8, 128>}, {transform_indices = @transform_10, window_bounds = array<i64: 8, 128>}]} {
    %c0_i32 = arith.constant 0 : i32
    %0 = arith.cmpi eq, %arg1, %c0_i32 : i32
    %1 = arith.extui %0 : i1 to i32
    %c0_i32_0 = arith.constant 0 : i32
    %2 = arith.cmpi ne, %1, %c0_i32_0 : i32
    scf.if %2 {
      %c0_25 = arith.constant 0 : index
      %c0_26 = arith.constant 0 : index
      %49 = vector.load %arg3[%c0_25, %c0_26] : memref<8x128xf32, #tpu.memory_space<vmem>>, vector<8x128xf32>
      %c0_27 = arith.constant 0 : index
      %c0_28 = arith.constant 0 : index
      %50 = vector.load %arg5[%c0_27, %c0_28] : memref<128x128xf32, #tpu.memory_space<vmem>>, vector<128x128xf32>
      %cst_29 = arith.constant dense<0.000000e+00> : vector<8x128xf32>
      %51 = tpu.matmul %49, %50, %cst_29 {dimension_numbers = #tpu.dot_dimension_numbers<[1], [0], [0], [1], [0, 0, 1, 1], [], []>} : vector<8x128xf32>, vector<128x128xf32>, vector<8x128xf32> -> vector<8x128xf32>
      %c0_30 = arith.constant 0 : index
      %c0_31 = arith.constant 0 : index
      %52 = vector.load %arg6[%c0_30, %c0_31] : memref<1x128xf32, #tpu.memory_space<vmem>>, vector<1x128xf32>
      %53 = vector.broadcast %52 : vector<1x128xf32> to vector<8x128xf32>
      %54 = arith.addf %51, %53 : vector<8x128xf32>
      %c0_32 = arith.constant 0 : index
      %c0_33 = arith.constant 0 : index
      %55 = vector.load %arg13[%c0_32, %c0_33] : memref<8x128xf32, #tpu.memory_space<vmem>>, vector<8x128xf32>
      tpu.vector_store %arg13[%c0_32, %c0_33], %54 {strides = array<i32>} : memref<8x128xf32, #tpu.memory_space<vmem>>, vector<8x128xf32>,
      %cst_34 = arith.constant 0xFF800000 : f32
      %56 = vector.broadcast %cst_34 : f32 to vector<8x1xf32>
      %c0_35 = arith.constant 0 : index
      %c0_36 = arith.constant 0 : index
      %57 = vector.load %arg14[%c0_35, %c0_36] : memref<8x1xf32, #tpu.memory_space<vmem>>, vector<8x1xf32>
      tpu.vector_store %arg14[%c0_35, %c0_36], %56 {strides = array<i32>} : memref<8x1xf32, #tpu.memory_space<vmem>>, vector<8x1xf32>,
      %cst_37 = arith.constant 0.000000e+00 : f32
      %58 = vector.broadcast %cst_37 : f32 to vector<8x1xf32>
      %c0_38 = arith.constant 0 : index
      %c0_39 = arith.constant 0 : index
      %59 = vector.load %arg15[%c0_38, %c0_39] : memref<8x1xf32, #tpu.memory_space<vmem>>, vector<8x1xf32>
      tpu.vector_store %arg15[%c0_38, %c0_39], %58 {strides = array<i32>} : memref<8x1xf32, #tpu.memory_space<vmem>>, vector<8x1xf32>,
      %cst_40 = arith.constant 0.000000e+00 : f32
      %60 = vector.broadcast %cst_40 : f32 to vector<8x128xf32>
      %c0_41 = arith.constant 0 : index
      %c0_42 = arith.constant 0 : index
      %61 = vector.load %arg16[%c0_41, %c0_42] : memref<8x128xf32, #tpu.memory_space<vmem>>, vector<8x128xf32>
      tpu.vector_store %arg16[%c0_41, %c0_42], %60 {strides = array<i32>} : memref<8x128xf32, #tpu.memory_space<vmem>>, vector<8x128xf32>,
    } else {
    }
    %c0 = arith.constant 0 : index
    %c0_1 = arith.constant 0 : index
    %c0_2 = arith.constant 0 : index
    %3 = vector.load %arg2[%c0, %c0_1, %c0_2] : memref<8x128x128xf32, #tpu.memory_space<vmem>>, vector<8x128x128xf32>
    %c0_3 = arith.constant 0 : index
    %c0_4 = arith.constant 0 : index
    %4 = vector.load %arg13[%c0_3, %c0_4] : memref<8x128xf32, #tpu.memory_space<vmem>>, vector<8x128xf32>
    %5 = vector.shape_cast %4 : vector<8x128xf32> to vector<8x1x128xf32>
    %6 = vector.broadcast %5 : vector<8x1x128xf32> to vector<8x128x128xf32>
    %7 = arith.mulf %3, %6 : vector<8x128x128xf32>
    %cst = arith.constant dense<0.000000e+00> : vector<8x128xf32>
    %8 = vector.multi_reduction <add>, %7, %cst [2] : vector<8x128x128xf32> to vector<8x128xf32>
    %c128_i32 = arith.constant 128 : i32
    %9 = arith.muli %arg1, %c128_i32 : i32
    %10 = tpu.iota {dimensions = array<i32: 1>} : vector<8x128xi32>
    %11 = vector.broadcast %9 : i32 to vector<8x128xi32>
    %12 = arith.addi %11, %10 : vector<8x128xi32>
    %c8_i32 = arith.constant 8 : i32
    %13 = vector.broadcast %c8_i32 : i32 to vector<8x128xi32>
    %14 = arith.cmpi slt, %12, %13 : vector<8x128xi32>
    %cst_5 = arith.constant -1.000000e+30 : f32
    %15 = vector.broadcast %cst_5 : f32 to vector<8x128xf32>
    %16 = arith.select %14, %8, %15 : vector<8x128xi1>, vector<8x128xf32>
    %c128_i32_6 = arith.constant 128 : i32
    %17 = arith.muli %arg1, %c128_i32_6 : i32
    %18 = tpu.assume_multiple %17, 128 : i32
    %c0_7 = arith.constant 0 : index
    %19 = arith.index_cast %18 : i32 to index
    %20 = vector.load %arg12[%c0_7, %19] : memref<8x128xf32, #tpu.memory_space<vmem>>, vector<8x128xf32>
    tpu.vector_store %arg12[%c0_7, %19], %16 {strides = array<i32>} : memref<8x128xf32, #tpu.memory_space<vmem>>, vector<8x128xf32>,
    %c0_8 = arith.constant 0 : index
    %c0_9 = arith.constant 0 : index
    %21 = vector.load %arg14[%c0_8, %c0_9] : memref<8x1xf32, #tpu.memory_space<vmem>>, vector<8x1xf32>
    %cst_10 = arith.constant dense<0xFF800000> : vector<8xf32>
    %22 = vector.multi_reduction <maximumf>, %16, %cst_10 [1] : vector<8x128xf32> to vector<8xf32>
    %23 = vector.shape_cast %22 : vector<8xf32> to vector<8x1xf32>
    %24 = arith.maximumf %21, %23 : vector<8x1xf32>
    %25 = arith.subf %21, %24 : vector<8x1xf32>
    %26 = math.exp %25 : vector<8x1xf32>
    %27 = vector.broadcast %24 : vector<8x1xf32> to vector<8x128xf32>
    %28 = arith.subf %16, %27 : vector<8x128xf32>
    %29 = math.exp %28 : vector<8x128xf32>
    %c0_11 = arith.constant 0 : index
    %c0_12 = arith.constant 0 : index
    %30 = vector.load %arg15[%c0_11, %c0_12] : memref<8x1xf32, #tpu.memory_space<vmem>>, vector<8x1xf32>
    %31 = arith.mulf %26, %30 : vector<8x1xf32>
    %cst_13 = arith.constant dense<0.000000e+00> : vector<8xf32>
    %32 = vector.multi_reduction <add>, %29, %cst_13 [1] : vector<8x128xf32> to vector<8xf32>
    %33 = vector.shape_cast %32 : vector<8xf32> to vector<8x1xf32>
    %34 = arith.addf %31, %33 : vector<8x1xf32>
    %c0_14 = arith.constant 0 : index
    %c0_15 = arith.constant 0 : index
    %35 = vector.load %arg15[%c0_14, %c0_15] : memref<8x1xf32, #tpu.memory_space<vmem>>, vector<8x1xf32>
    tpu.vector_store %arg15[%c0_14, %c0_15], %34 {strides = array<i32>} : memref<8x1xf32, #tpu.memory_space<vmem>>, vector<8x1xf32>,
    %c0_16 = arith.constant 0 : index
    %c0_17 = arith.constant 0 : index
    %36 = vector.load %arg16[%c0_16, %c0_17] : memref<8x128xf32, #tpu.memory_space<vmem>>, vector<8x128xf32>
    %37 = vector.broadcast %26 : vector<8x1xf32> to vector<8x128xf32>
    %38 = arith.mulf %37, %36 : vector<8x128xf32>
    %39 = vector.shape_cast %29 : vector<8x128xf32> to vector<8x128x1xf32>
    %40 = vector.broadcast %39 : vector<8x128x1xf32> to vector<8x128x128xf32>
    %41 = arith.mulf %40, %3 : vector<8x128x128xf32>
    %cst_18 = arith.constant dense<0.000000e+00> : vector<8x128xf32>
    %42 = vector.multi_reduction <add>, %41, %cst_18 [1] : vector<8x128x128xf32> to vector<8x128xf32>
    %43 = arith.addf %38, %42 : vector<8x128xf32>
    %c0_19 = arith.constant 0 : index
    %c0_20 = arith.constant 0 : index
    %44 = vector.load %arg16[%c0_19, %c0_20] : memref<8x128xf32, #tpu.memory_space<vmem>>, vector<8x128xf32>
    tpu.vector_store %arg16[%c0_19, %c0_20], %43 {strides = array<i32>} : memref<8x128xf32, #tpu.memory_space<vmem>>, vector<8x128xf32>,
    %c0_21 = arith.constant 0 : index
    %c0_22 = arith.constant 0 : index
    %45 = vector.load %arg14[%c0_21, %c0_22] : memref<8x1xf32, #tpu.memory_space<vmem>>, vector<8x1xf32>
    tpu.vector_store %arg14[%c0_21, %c0_22], %24 {strides = array<i32>} : memref<8x1xf32, #tpu.memory_space<vmem>>, vector<8x1xf32>,
    %c0_i32_23 = arith.constant 0 : i32
    %46 = arith.cmpi eq, %arg1, %c0_i32_23 : i32
    %47 = arith.extui %46 : i1 to i32
    %c0_i32_24 = arith.constant 0 : i32
    %48 = arith.cmpi ne, %47, %c0_i32_24 : i32
    scf.if %48 {
      %c0_25 = arith.constant 0 : index
      %c0_26 = arith.constant 0 : index
      %49 = vector.load %arg15[%c0_25, %c0_26] : memref<8x1xf32, #tpu.memory_space<vmem>>, vector<8x1xf32>
      %50 = tpu.reciprocal %49 : vector<8x1xf32> -> vector<8x1xf32>
      %c0_27 = arith.constant 0 : index
      %c0_28 = arith.constant 0 : index
      %51 = vector.load %arg12[%c0_27, %c0_28] : memref<8x128xf32, #tpu.memory_space<vmem>>, vector<8x128xf32>
      %c0_29 = arith.constant 0 : index
      %c0_30 = arith.constant 0 : index
      %52 = vector.load %arg14[%c0_29, %c0_30] : memref<8x1xf32, #tpu.memory_space<vmem>>, vector<8x1xf32>
      %53 = vector.broadcast %52 : vector<8x1xf32> to vector<8x128xf32>
      %54 = arith.subf %51, %53 : vector<8x128xf32>
      %55 = math.exp %54 : vector<8x128xf32>
      %56 = vector.broadcast %50 : vector<8x1xf32> to vector<8x128xf32>
      %57 = arith.mulf %55, %56 : vector<8x128xf32>
      %c0_31 = arith.constant 0 : index
      %c0_32 = arith.constant 0 : index
      %58 = vector.load %arg12[%c0_31, %c0_32] : memref<8x128xf32, #tpu.memory_space<vmem>>, vector<8x128xf32>
      tpu.vector_store %arg12[%c0_31, %c0_32], %57 {strides = array<i32>} : memref<8x128xf32, #tpu.memory_space<vmem>>, vector<8x128xf32>,
      %c0_33 = arith.constant 0 : index
      %c0_34 = arith.constant 0 : index
      %59 = vector.load %arg16[%c0_33, %c0_34] : memref<8x128xf32, #tpu.memory_space<vmem>>, vector<8x128xf32>
      %60 = vector.broadcast %50 : vector<8x1xf32> to vector<8x128xf32>
      %61 = arith.mulf %59, %60 : vector<8x128xf32>
      %c0_35 = arith.constant 0 : index
      %c0_36 = arith.constant 0 : index
      %62 = vector.load %arg7[%c0_35, %c0_36] : memref<128x128xf32, #tpu.memory_space<vmem>>, vector<128x128xf32>
      %cst_37 = arith.constant dense<0.000000e+00> : vector<8x128xf32>
      %63 = tpu.matmul %61, %62, %cst_37 {dimension_numbers = #tpu.dot_dimension_numbers<[1], [0], [0], [1], [0, 0, 1, 1], [], []>} : vector<8x128xf32>, vector<128x128xf32>, vector<8x128xf32> -> vector<8x128xf32>
      %c0_38 = arith.constant 0 : index
      %c0_39 = arith.constant 0 : index
      %64 = vector.load %arg3[%c0_38, %c0_39] : memref<8x128xf32, #tpu.memory_space<vmem>>, vector<8x128xf32>
      %c0_40 = arith.constant 0 : index
      %c0_41 = arith.constant 0 : index
      %65 = vector.load %arg8[%c0_40, %c0_41] : memref<128x128xf32, #tpu.memory_space<vmem>>, vector<128x128xf32>
      %cst_42 = arith.constant dense<0.000000e+00> : vector<8x128xf32>
      %66 = tpu.matmul %64, %65, %cst_42 {dimension_numbers = #tpu.dot_dimension_numbers<[1], [0], [0], [1], [0, 0, 1, 1], [], []>} : vector<8x128xf32>, vector<128x128xf32>, vector<8x128xf32> -> vector<8x128xf32>
      %67 = arith.addf %63, %66 : vector<8x128xf32>
      %c0_43 = arith.constant 0 : index
      %c0_44 = arith.constant 0 : index
      %68 = vector.load %arg4[%c0_43, %c0_44] : memref<8x128xf32, #tpu.memory_space<vmem>>, vector<8x128xf32>
      %c0_45 = arith.constant 0 : index
      %c0_46 = arith.constant 0 : index
      %69 = vector.load %arg9[%c0_45, %c0_46] : memref<128x128xf32, #tpu.memory_space<vmem>>, vector<128x128xf32>
      %cst_47 = arith.constant dense<0.000000e+00> : vector<8x128xf32>
      %70 = tpu.matmul %68, %69, %cst_47 {dimension_numbers = #tpu.dot_dimension_numbers<[1], [0], [0], [1], [0, 0, 1, 1], [], []>} : vector<8x128xf32>, vector<128x128xf32>, vector<8x128xf32> -> vector<8x128xf32>
      %71 = arith.addf %67, %70 : vector<8x128xf32>
      %c0_48 = arith.constant 0 : index
      %c0_49 = arith.constant 0 : index
      %72 = vector.load %arg10[%c0_48, %c0_49] : memref<1x128xf32, #tpu.memory_space<vmem>>, vector<1x128xf32>
      %73 = vector.broadcast %72 : vector<1x128xf32> to vector<8x128xf32>
      %74 = arith.addf %71, %73 : vector<8x128xf32>
      %75 = math.tanh %74 : vector<8x128xf32>
      %c0_50 = arith.constant 0 : index
      %c0_51 = arith.constant 0 : index
      %76 = vector.load %arg11[%c0_50, %c0_51] : memref<8x128xf32, #tpu.memory_space<vmem>>, vector<8x128xf32>
      tpu.vector_store %arg11[%c0_50, %c0_51], %75 {strides = array<i32>} : memref<8x128xf32, #tpu.memory_space<vmem>>, vector<8x128xf32>,
    } else {
    }
    return
  }
  func.func @transform_0(%arg0: i32, %arg1: i32) -> (i32, i32, i32) {
    %c0_i32 = arith.constant 0 : i32
    %c0_i32_0 = arith.constant 0 : i32
    return %arg0, %arg1, %c0_i32 : i32, i32, i32
  }
  func.func @transform_1(%arg0: i32, %arg1: i32) -> (i32, i32) {
    %c0_i32 = arith.constant 0 : i32
    %c0_i32_0 = arith.constant 0 : i32
    return %arg0, %c0_i32 : i32, i32
  }
  func.func @transform_2(%arg0: i32, %arg1: i32) -> (i32, i32) {
    %c0_i32 = arith.constant 0 : i32
    %c0_i32_0 = arith.constant 0 : i32
    return %arg0, %c0_i32 : i32, i32
  }
  func.func @transform_3(%arg0: i32, %arg1: i32) -> (i32, i32) {
    %c0_i32 = arith.constant 0 : i32
    %c0_i32_0 = arith.constant 0 : i32
    %c0_i32_1 = arith.constant 0 : i32
    return %c0_i32, %c0_i32_0 : i32, i32
  }
  func.func @transform_4(%arg0: i32, %arg1: i32) -> (i32, i32) {
    %c0_i32 = arith.constant 0 : i32
    %c0_i32_0 = arith.constant 0 : i32
    %c0_i32_1 = arith.constant 0 : i32
    return %c0_i32, %c0_i32_0 : i32, i32
  }
  func.func @transform_5(%arg0: i32, %arg1: i32) -> (i32, i32) {
    %c0_i32 = arith.constant 0 : i32
    %c0_i32_0 = arith.constant 0 : i32
    %c0_i32_1 = arith.constant 0 : i32
    return %c0_i32, %c0_i32_0 : i32, i32
  }
  func.func @transform_6(%arg0: i32, %arg1: i32) -> (i32, i32) {
    %c0_i32 = arith.constant 0 : i32
    %c0_i32_0 = arith.constant 0 : i32
    %c0_i32_1 = arith.constant 0 : i32
    return %c0_i32, %c0_i32_0 : i32, i32
  }
  func.func @transform_7(%arg0: i32, %arg1: i32) -> (i32, i32) {
    %c0_i32 = arith.constant 0 : i32
    %c0_i32_0 = arith.constant 0 : i32
    %c0_i32_1 = arith.constant 0 : i32
    return %c0_i32, %c0_i32_0 : i32, i32
  }
  func.func @transform_8(%arg0: i32, %arg1: i32) -> (i32, i32) {
    %c0_i32 = arith.constant 0 : i32
    %c0_i32_0 = arith.constant 0 : i32
    %c0_i32_1 = arith.constant 0 : i32
    return %c0_i32, %c0_i32_0 : i32, i32
  }
  func.func @transform_9(%arg0: i32, %arg1: i32) -> (i32, i32) {
    %c0_i32 = arith.constant 0 : i32
    %c0_i32_0 = arith.constant 0 : i32
    return %arg0, %c0_i32 : i32, i32
  }
  func.func @transform_10(%arg0: i32, %arg1: i32) -> (i32, i32) {
    %c0_i32 = arith.constant 0 : i32
    %c0_i32_0 = arith.constant 0 : i32
    return %arg0, %c0_i32 : i32, i32
  }
}

</mosaic_0001>

<llo_original>
// kernel: tpu_custom_call.1
$region0: #{tpu_custom_call.1}
  #allocation0 [shape = 'u32[]', space=smem, size = 0x4, offset = 0x4, fixed_abs, tag = 'smem constant byte address 0x4 - core index']
  #allocation1 [shape = 'u32[72,128]{1,0:T(1,128)}', space=vmem, size = 0x9000, scoped, tag = 'internal scratch']
  #allocation2 [shape = 'f32[8,128]{1,0:T(8,128)}', space=vmem, size = 0x1000, scoped, tag = 'scratch operand']
  #allocation3 [shape = 'f32[8,1]{1,0:T(8,128)}', space=vmem, size = 0x1000, scoped, tag = 'scratch operand']
  #allocation4 [shape = 'f32[8,1]{1,0:T(8,128)}', space=vmem, size = 0x1000, scoped, tag = 'scratch operand']
  #allocation5 [shape = 'f32[8,128]{1,0:T(8,128)}', space=vmem, size = 0x1000, scoped, tag = 'scratch operand']
  %s0 = inlined_call_operand.hbm [shape: f32[8,128,128], index: 0, kind: input, shape index: {}]
  %s1 = inlined_call_operand.hbm [shape: f32[8,128], index: 1, kind: input, shape index: {}]
  %s2 = inlined_call_operand.hbm [shape: f32[8,128], index: 2, kind: input, shape index: {}]
  %s3 = inlined_call_operand.hbm [shape: f32[128,128], index: 3, kind: input, shape index: {}]
  %s4 = inlined_call_operand.vmem [shape: f32[1,128], index: 4, kind: input, shape index: {}]
  %s5 = inlined_call_operand.hbm [shape: f32[128,128], index: 5, kind: input, shape index: {}]
  %s6 = inlined_call_operand.hbm [shape: f32[128,128], index: 6, kind: input, shape index: {}]
  %s7 = inlined_call_operand.hbm [shape: f32[128,128], index: 7, kind: input, shape index: {}]
  %s8 = inlined_call_operand.vmem [shape: f32[1,128], index: 8, kind: input, shape index: {}]
  %s9 = inlined_call_operand.hbm [shape: f32[8,128], index: 9, kind: output, shape index: {0}]
  %s10 = inlined_call_operand.hbm [shape: f32[8,128], index: 10, kind: output, shape index: {1}]
  %11 = xla_tuple %s9, %s10
  %s12 = sld [smem:[#allocation0]]
  $region90: #{tpu_custom_call.1} parent=0
    _
  %s14 = ssub.s32 1, %s12
  %s15 = scalar_select 0, %s14, %s12
  $region1: #{tpu_custom_call.1} parent=0
    #allocation6 [shape = 'u8[524288]{0}', space=vmem, size = 0x80000, scoped, tag = 'input window, operand 0, single buffered']
    #allocation7 [shape = 's32[1]{0}', space=sflag, size = 0x4, scoped, tag = 'scoped memory for tpu_custom_call.1']
    #allocation8 [shape = 's32[1]{0}', space=sflag, size = 0x4, scoped, tag = 'scoped memory for tpu_custom_call.1']
    #allocation9 [shape = 'u8[4096]{0}', space=vmem, size = 0x1000, scoped, tag = 'input window, operand 1, single buffered']
    #allocation10 [shape = 's32[1]{0}', space=sflag, size = 0x4, scoped, tag = 'scoped memory for tpu_custom_call.1']
    #allocation11 [shape = 'u8[4096]{0}', space=vmem, size = 0x1000, scoped, tag = 'input window, operand 2, single buffered']
    #allocation12 [shape = 'u8[65536]{0}', space=vmem, size = 0x10000, scoped, tag = 'input window, operand 3, single buffered']
    #allocation13 [shape = 's32[1]{0}', space=sflag, size = 0x4, scoped, tag = 'scoped memory for tpu_custom_call.1']
    #allocation14 [shape = 'u8[65536]{0}', space=vmem, size = 0x10000, scoped, tag = 'input window, operand 5, single buffered']
    #allocation15 [shape = 'u8[65536]{0}', space=vmem, size = 0x10000, scoped, tag = 'input window, operand 6, single buffered']
    #allocation16 [shape = 's32[1]{0}', space=sflag, size = 0x4, scoped, tag = 'scoped memory for tpu_custom_call.1']
    #allocation17 [shape = 'u8[65536]{0}', space=vmem, size = 0x10000, scoped, tag = 'input window, operand 7, single buffered']
    #allocation18 [shape = 'u8[4096]{0}', space=vmem, size = 0x1000, scoped, tag = 'output window, operand 0, single buffered']
    #allocation19 [shape = 'u8[4096]{0}', space=vmem, size = 0x1000, scoped, tag = 'output window, operand 1, single buffered']
    #allocation20 [shape = 's32[1]{0}', space=sflag, size = 0x4, scoped, tag = 'scoped memory for tpu_custom_call.1']
    %16 = vsyncpa [#allocation7], 0
    %17 = vsyncpa [#allocation10], 0
    %18 = vsyncpa [#allocation13], 0
    %19 = vsyncpa [#allocation16], 0
    %20 = vsyncpa [#allocation8], 0
    %21 = vsyncpa [#allocation20], 0
    // Predicated region
    $region2: #{tpu_custom_call.1} parent=1 // pred_check
      _
    $region3: #{tpu_custom_call.1} parent=1 // pred_check_branch
      %23 = sbr.rel (0) target = $region5
    $region4: #{tpu_custom_call.1} parent=1 // pred_region
      %25 = vsyncadd [#allocation7], 0
      %s26 = sshll.u32 %s0, 4
      %s27 = int_to_ptr.hbm [resolvable:$true] %s26
      %s28 = sshll.u32 [#allocation6], 4
      %s29 = int_to_ptr.vmem [resolvable:$true] %s28
      %34 = dma.hbm_to_vmem [thread:$0]  %s27, 16384, %s29, [#allocation7], 128, 128, 8
    $region5: #{tpu_custom_call.1} parent=1 // pred_fallthru
      _
    // Predicated region
    $region6: #{tpu_custom_call.1} parent=1 // pred_check
      _
    $region7: #{tpu_custom_call.1} parent=1 // pred_check_branch
      %36 = sbr.rel (0) target = $region9
    $region8: #{tpu_custom_call.1} parent=1 // pred_region
      %38 = vsyncadd [#allocation10], 0
      %s40 = sshll.u32 %s1, 4
      %s41 = int_to_ptr.hbm [resolvable:$true] %s40
      %s42 = sshll.u32 [#allocation9], 4
      %s43 = int_to_ptr.vmem [resolvable:$true] %s42
      %45 = dma.hbm_to_vmem [thread:$0]  %s41, 128, %s43, [#allocation10]
    $region9: #{tpu_custom_call.1} parent=1 // pred_fallthru
      _
    // Predicated region
    $region10: #{tpu_custom_call.1} parent=1 // pred_check
      _
    $region11: #{tpu_custom_call.1} parent=1 // pred_check_branch
      %47 = sbr.rel (0) target = $region13
    $region12: #{tpu_custom_call.1} parent=1 // pred_region
      %49 = vsyncadd [#allocation10], 0
      %s51 = sshll.u32 %s2, 4
      %s52 = int_to_ptr.hbm [resolvable:$true] %s51
      %s53 = sshll.u32 [#allocation11], 4
      %s54 = int_to_ptr.vmem [resolvable:$true] %s53
      %56 = dma.hbm_to_vmem [thread:$0]  %s52, 128, %s54, [#allocation10]
    $region13: #{tpu_custom_call.1} parent=1 // pred_fallthru
      _
    // Predicated region
    $region14: #{tpu_custom_call.1} parent=1 // pred_check
      _
    $region15: #{tpu_custom_call.1} parent=1 // pred_check_branch
      %58 = sbr.rel (0) target = $region17
    $region16: #{tpu_custom_call.1} parent=1 // pred_region
      %60 = vsyncadd [#allocation13], 0
      %s61 = sshll.u32 %s3, 4
      %s62 = int_to_ptr.hbm [resolvable:$true] %s61
      %s63 = sshll.u32 [#allocation12], 4
      %s64 = int_to_ptr.vmem [resolvable:$true] %s63
      %69 = dma.hbm_to_vmem [thread:$0]  %s62, 2048, %s64, [#allocation13], 128, 128, 8
    $region17: #{tpu_custom_call.1} parent=1 // pred_fallthru
      _
    // Predicated region
    $region18: #{tpu_custom_call.1} parent=1 // pred_check
      _
    $region19: #{tpu_custom_call.1} parent=1 // pred_check_branch
      %71 = sbr.rel (0) target = $region21
    $region20: #{tpu_custom_call.1} parent=1 // pred_region
      _
    $region21: #{tpu_custom_call.1} parent=1 // pred_fallthru
      _
    // Predicated region
    $region22: #{tpu_custom_call.1} parent=1 // pred_check
      _
    $region23: #{tpu_custom_call.1} parent=1 // pred_check_branch
      %73 = sbr.rel (0) target = $region25
    $region24: #{tpu_custom_call.1} parent=1 // pred_region
      %75 = vsyncadd [#allocation13], 0
      %s76 = sshll.u32 %s5, 4
      %s77 = int_to_ptr.hbm [resolvable:$true] %s76
      %s78 = sshll.u32 [#allocation14], 4
      %s79 = int_to_ptr.vmem [resolvable:$true] %s78
      %84 = dma.hbm_to_vmem [thread:$0]  %s77, 2048, %s79, [#allocation13], 128, 128, 8
    $region25: #{tpu_custom_call.1} parent=1 // pred_fallthru
      _
    // Predicated region
    $region26: #{tpu_custom_call.1} parent=1 // pred_check
      _
    $region27: #{tpu_custom_call.1} parent=1 // pred_check_branch
      %86 = sbr.rel (0) target = $region29
    $region28: #{tpu_custom_call.1} parent=1 // pred_region
      %88 = vsyncadd [#allocation16], 0
      %s89 = sshll.u32 %s6, 4
      %s90 = int_to_ptr.hbm [resolvable:$true] %s89
      %s91 = sshll.u32 [#allocation15], 4
      %s92 = int_to_ptr.vmem [resolvable:$true] %s91
      %97 = dma.hbm_to_vmem [thread:$0]  %s90, 2048, %s92, [#allocation16], 128, 128, 8
    $region29: #{tpu_custom_call.1} parent=1 // pred_fallthru
      _
    // Predicated region
    $region30: #{tpu_custom_call.1} parent=1 // pred_check
      _
    $region31: #{tpu_custom_call.1} parent=1 // pred_check_branch
      %99 = sbr.rel (0) target = $region33
    $region32: #{tpu_custom_call.1} parent=1 // pred_region
      %101 = vsyncadd [#allocation16], 0
      %s102 = sshll.u32 %s7, 4
      %s103 = int_to_ptr.hbm [resolvable:$true] %s102
      %s104 = sshll.u32 [#allocation17], 4
      %s105 = int_to_ptr.vmem [resolvable:$true] %s104
      %110 = dma.hbm_to_vmem [thread:$0]  %s103, 2048, %s105, [#allocation16], 128, 128, 8
    $region33: #{tpu_custom_call.1} parent=1 // pred_fallthru
      _
    // Predicated region
    $region34: #{tpu_custom_call.1} parent=1 // pred_check
      _
    $region35: #{tpu_custom_call.1} parent=1 // pred_check_branch
      %112 = sbr.rel (0) target = $region37
    $region36: #{tpu_custom_call.1} parent=1 // pred_region
      _
    $region37: #{tpu_custom_call.1} parent=1 // pred_fallthru
      _
    // Predicated region
    $region38: #{tpu_custom_call.1} parent=1 // pred_check
      _
    $region39: #{tpu_custom_call.1} parent=1 // pred_check_branch
      %114 = sbr.rel (0) target = $region41
    $region40: #{tpu_custom_call.1} parent=1 // pred_region
      %116 = dma.done [#allocation7], 16384
    $region41: #{tpu_custom_call.1} parent=1 // pred_fallthru
      _
    // Predicated region
    $region42: #{tpu_custom_call.1} parent=1 // pred_check
      _
    $region43: #{tpu_custom_call.1} parent=1 // pred_check_branch
      %118 = sbr.rel (0) target = $region45
    $region44: #{tpu_custom_call.1} parent=1 // pred_region
      %120 = dma.done [#allocation10], 128
    $region45: #{tpu_custom_call.1} parent=1 // pred_fallthru
      _
    // Predicated region
    $region46: #{tpu_custom_call.1} parent=1 // pred_check
      _
    $region47: #{tpu_custom_call.1} parent=1 // pred_check_branch
      %122 = sbr.rel (0) target = $region49
    $region48: #{tpu_custom_call.1} parent=1 // pred_region
      %124 = dma.done [#allocation10], 128
    $region49: #{tpu_custom_call.1} parent=1 // pred_fallthru
      _
    // Predicated region
    $region50: #{tpu_custom_call.1} parent=1 // pred_check
      _
    $region51: #{tpu_custom_call.1} parent=1 // pred_check_branch
      %126 = sbr.rel (0) target = $region53
    $region52: #{tpu_custom_call.1} parent=1 // pred_region
      %128 = dma.done [#allocation13], 2048
    $region53: #{tpu_custom_call.1} parent=1 // pred_fallthru
      _
    // Predicated region
    $region54: #{tpu_custom_call.1} parent=1 // pred_check
      _
    $region55: #{tpu_custom_call.1} parent=1 // pred_check_branch
      %130 = sbr.rel (0) target = $region57
    $region56: #{tpu_custom_call.1} parent=1 // pred_region
      %132 = dma.done [#allocation13], 2048
    $region57: #{tpu_custom_call.1} parent=1 // pred_fallthru
      _
    // Predicated region
    $region58: #{tpu_custom_call.1} parent=1 // pred_check
      _
    $region59: #{tpu_custom_call.1} parent=1 // pred_check_branch
      %134 = sbr.rel (0) target = $region61
    $region60: #{tpu_custom_call.1} parent=1 // pred_region
      %136 = dma.done [#allocation16], 2048
    $region61: #{tpu_custom_call.1} parent=1 // pred_fallthru
      _
    // Predicated region
    $region62: #{tpu_custom_call.1} parent=1 // pred_check
      _
    $region63: #{tpu_custom_call.1} parent=1 // pred_check_branch
      %138 = sbr.rel (0) target = $region65
    $region64: #{tpu_custom_call.1} parent=1 // pred_region
      %140 = dma.done [#allocation16], 2048
    $region65: #{tpu_custom_call.1} parent=1 // pred_fallthru
      _
    %p141 = scmp.eq.s32.totalorder 0, 0
    // Predicated region
    $region66: #{tpu_custom_call.1} parent=1 // pred_check
      %p142 = pneg %p141
    $region67: #{tpu_custom_call.1} parent=1 // pred_check_branch
      %144 = sbr.rel (%p142) target = $region69
    $region68: #{tpu_custom_call.1} parent=1 // pred_region
      %v145 = vld [vmem:[#allocation9] sm:$0xff]
      %v146 = vld [vmem:[#allocation12] sm:$0xff]
      %v147 = vld [vmem:[#allocation12 + $0x8] sm:$0xff]
      %v148 = vld [vmem:[#allocation12 + $0x10] sm:$0xff]
      %v149 = vld [vmem:[#allocation12 + $0x18] sm:$0xff]
      %v150 = vld [vmem:[#allocation12 + $0x20] sm:$0xff]
      %v151 = vld [vmem:[#allocation12 + $0x28] sm:$0xff]
      %v152 = vld [vmem:[#allocation12 + $0x30] sm:$0xff]
      %v153 = vld [vmem:[#allocation12 + $0x38] sm:$0xff]
      %v154 = vld [vmem:[#allocation12 + $0x40] sm:$0xff]
      %v155 = vld [vmem:[#allocation12 + $0x48] sm:$0xff]
      %v156 = vld [vmem:[#allocation12 + $0x50] sm:$0xff]
      %v157 = vld [vmem:[#allocation12 + $0x58] sm:$0xff]
      %v158 = vld [vmem:[#allocation12 + $0x60] sm:$0xff]
      %v159 = vld [vmem:[#allocation12 + $0x68] sm:$0xff]
      %v160 = vld [vmem:[#allocation12 + $0x70] sm:$0xff]
      %v161 = vld [vmem:[#allocation12 + $0x78] sm:$0xff]
      %v162 = vld [vmem:[%s4] sm:$0x1]
      %v164 = vperm.slane %v162, 0
      %166 = vmatpush.msra.mxu0 %v161
      %167 = vmatpush.msra.mxu0 %v160
      %168 = vmatpush.msra.mxu0 %v159
      %169 = vmatpush.msra.mxu0 %v158
      %170 = vmatpush.msra.mxu0 %v157
      %171 = vmatpush.msra.mxu0 %v156
      %172 = vmatpush.msra.mxu0 %v155
      %173 = vmatpush.msra.mxu0 %v154
      %174 = vmatpush.msra.mxu0 %v153
      %175 = vmatpush.msra.mxu0 %v152
      %176 = vmatpush.msra.mxu0 %v151
      %177 = vmatpush.msra.mxu0 %v150
      %178 = vmatpush.msra.mxu0 %v149
      %179 = vmatpush.msra.mxu0 %v148
      %180 = vmatpush.msra.mxu0 %v147
      %181 = vmatpush.msra.mxu0 %v146
      %182 = vmatmul.f32.gmra.mxu0 %v145
      %v183 = vpop.f32.mrf.mxu0
      %v184 = vadd.f32 %v164, %v183
      %185 = vdwg.mxu0
      %186 = vst [vmem:[#allocation2] sm:$0xff] %v184
      %vm187 = vcmask 7168
      %188 = vst.msk [vmem:[#allocation3] sm:$0xff] %vm187, -inf
      %189 = vst.msk [vmem:[#allocation4] sm:$0xff] %vm187, 0.0
      %190 = vst [vmem:[#allocation5] sm:$0xff] 0.0
    $region69: #{tpu_custom_call.1} parent=1 // pred_fallthru
      _
    %v191 = vld [vmem:[#allocation6] sm:$0xff]
    %v192 = vld [vmem:[#allocation6 + $0x8] sm:$0xff]
    %v193 = vld [vmem:[#allocation6 + $0x10] sm:$0xff]
    %v194 = vld [vmem:[#allocation6 + $0x18] sm:$0xff]
    %v195 = vld [vmem:[#allocation6 + $0x20] sm:$0xff]
    %v196 = vld [vmem:[#allocation6 + $0x28] sm:$0xff]
    %v197 = vld [vmem:[#allocation6 + $0x30] sm:$0xff]
    %v198 = vld [vmem:[#allocation6 + $0x38] sm:$0xff]
    %v199 = vld [vmem:[#allocation6 + $0x40] sm:$0xff]
    %v200 = vld [vmem:[#allocation6 + $0x48] sm:$0xff]
    %v201 = vld [vmem:[#allocation6 + $0x50] sm:$0xff]
    %v202 = vld [vmem:[#allocation6 + $0x58] sm:$0xff]
    %v203 = vld [vmem:[#allocation6 + $0x60] sm:$0xff]
    %v204 = vld [vmem:[#allocation6 + $0x68] sm:$0xff]
    %v205 = vld [vmem:[#allocation6 + $0x70] sm:$0xff]
    %v206 = vld [vmem:[#allocation6 + $0x78] sm:$0xff]
    %v207 = vld [vmem:[#allocation6 + $0x80] sm:$0xff]
    %v208 = vld [vmem:[#allocation6 + $0x88] sm:$0xff]
    %v209 = vld [vmem:[#allocation6 + $0x90] sm:$0xff]
    %v210 = vld [vmem:[#allocation6 + $0x98] sm:$0xff]
    %v211 = vld [vmem:[#allocation6 + $0xa0] sm:$0xff]
    %v212 = vld [vmem:[#allocation6 + $0xa8] sm:$0xff]
    %v213 = vld [vmem:[#allocation6 + $0xb0] sm:$0xff]
    %v214 = vld [vmem:[#allocation6 + $0xb8] sm:$0xff]
    %v215 = vld [vmem:[#allocation6 + $0xc0] sm:$0xff]
    %v216 = vld [vmem:[#allocation6 + $0xc8] sm:$0xff]
    %v217 = vld [vmem:[#allocation6 + $0xd0] sm:$0xff]
    %v218 = vld [vmem:[#allocation6 + $0xd8] sm:$0xff]
    %v219 = vld [vmem:[#allocation6 + $0xe0] sm:$0xff]
    %v220 = vld [vmem:[#allocation6 + $0xe8] sm:$0xff]
    %v221 = vld [vmem:[#allocation6 + $0xf0] sm:$0xff]
    %v222 = vld [vmem:[#allocation6 + $0xf8] sm:$0xff]
    %v223 = vld [vmem:[#allocation6 + $0x100] sm:$0xff]
    %v224 = vld [vmem:[#allocation6 + $0x108] sm:$0xff]
    %v225 = vld [vmem:[#allocation6 + $0x110] sm:$0xff]
    %v226 = vld [vmem:[#allocation6 + $0x118] sm:$0xff]
    %v227 = vld [vmem:[#allocation6 + $0x120] sm:$0xff]
    %v228 = vld [vmem:[#allocation6 + $0x128] sm:$0xff]
    %v229 = vld [vmem:[#allocation6 + $0x130] sm:$0xff]
    %v230 = vld [vmem:[#allocation6 + $0x138] sm:$0xff]
    %v231 = vld [vmem:[#allocation6 + $0x140] sm:$0xff]
    %v232 = vld [vmem:[#allocation6 + $0x148] sm:$0xff]
    %v233 = vld [vmem:[#allocation6 + $0x150] sm:$0xff]
    %v234 = vld [vmem:[#allocation6 + $0x158] sm:$0xff]
    %v235 = vld [vmem:[#allocation6 + $0x160] sm:$0xff]
    %v236 = vld [vmem:[#allocation6 + $0x168] sm:$0xff]
    %v237 = vld [vmem:[#allocation6 + $0x170] sm:$0xff]
    %v238 = vld [vmem:[#allocation6 + $0x178] sm:$0xff]
    %v239 = vld [vmem:[#allocation6 + $0x180] sm:$0xff]
    %v240 = vld [vmem:[#allocation6 + $0x188] sm:$0xff]
    %v241 = vld [vmem:[#allocation6 + $0x190] sm:$0xff]
    %v242 = vld [vmem:[#allocation6 + $0x198] sm:$0xff]
    %v243 = vld [vmem:[#allocation6 + $0x1a0] sm:$0xff]
    %v244 = vld [vmem:[#allocation6 + $0x1a8] sm:$0xff]
    %v245 = vld [vmem:[#allocation6 + $0x1b0] sm:$0xff]
    %v246 = vld [vmem:[#allocation6 + $0x1b8] sm:$0xff]
    %v247 = vld [vmem:[#allocation6 + $0x1c0] sm:$0xff]
    %v248 = vld [vmem:[#allocation6 + $0x1c8] sm:$0xff]
    %v249 = vld [vmem:[#allocation6 + $0x1d0] sm:$0xff]
    %v250 = vld [vmem:[#allocation6 + $0x1d8] sm:$0xff]
    %v251 = vld [vmem:[#allocation6 + $0x1e0] sm:$0xff]
    %v252 = vld [vmem:[#allocation6 + $0x1e8] sm:$0xff]
    %v253 = vld [vmem:[#allocation6 + $0x1f0] sm:$0xff]
    %v254 = vld [vmem:[#allocation6 + $0x1f8] sm:$0xff]
    %v255 = vld [vmem:[#allocation6 + $0x200] sm:$0xff]
    %v256 = vld [vmem:[#allocation6 + $0x208] sm:$0xff]
    %v257 = vld [vmem:[#allocation6 + $0x210] sm:$0xff]
    %v258 = vld [vmem:[#allocation6 + $0x218] sm:$0xff]
    %v259 = vld [vmem:[#allocation6 + $0x220] sm:$0xff]
    %v260 = vld [vmem:[#allocation6 + $0x228] sm:$0xff]
    %v261 = vld [vmem:[#allocation6 + $0x230] sm:$0xff]
    %v262 = vld [vmem:[#allocation6 + $0x238] sm:$0xff]
    %v263 = vld [vmem:[#allocation6 + $0x240] sm:$0xff]
    %v264 = vld [vmem:[#allocation6 + $0x248] sm:$0xff]
    %v265 = vld [vmem:[#allocation6 + $0x250] sm:$0xff]
    %v266 = vld [vmem:[#allocation6 + $0x258] sm:$0xff]
    %v267 = vld [vmem:[#allocation6 + $0x260] sm:$0xff]
    %v268 = vld [vmem:[#allocation6 + $0x268] sm:$0xff]
    %v269 = vld [vmem:[#allocation6 + $0x270] sm:$0xff]
    %v270 = vld [vmem:[#allocation6 + $0x278] sm:$0xff]
    %v271 = vld [vmem:[#allocation6 + $0x280] sm:$0xff]
    %v272 = vld [vmem:[#allocation6 + $0x288] sm:$0xff]
    %v273 = vld [vmem:[#allocation6 + $0x290] sm:$0xff]
    %v274 = vld [vmem:[#allocation6 + $0x298] sm:$0xff]
    %v275 = vld [vmem:[#allocation6 + $0x2a0] sm:$0xff]
    %v276 = vld [vmem:[#allocation6 + $0x2a8] sm:$0xff]
    %v277 = vld [vmem:[#allocation6 + $0x2b0] sm:$0xff]
    %v278 = vld [vmem:[#allocation6 + $0x2b8] sm:$0xff]
    %v279 = vld [vmem:[#allocation6 + $0x2c0] sm:$0xff]
    %v280 = vld [vmem:[#allocation6 + $0x2c8] sm:$0xff]
    %v281 = vld [vmem:[#allocation6 + $0x2d0] sm:$0xff]
    %v282 = vld [vmem:[#allocation6 + $0x2d8] sm:$0xff]
    %v283 = vld [vmem:[#allocation6 + $0x2e0] sm:$0xff]
    %v284 = vld [vmem:[#allocation6 + $0x2e8] sm:$0xff]
    %v285 = vld [vmem:[#allocation6 + $0x2f0] sm:$0xff]
    %v286 = vld [vmem:[#allocation6 + $0x2f8] sm:$0xff]
    %v287 = vld [vmem:[#allocation6 + $0x300] sm:$0xff]
    %v288 = vld [vmem:[#allocation6 + $0x308] sm:$0xff]
    %v289 = vld [vmem:[#allocation6 + $0x310] sm:$0xff]
    %v290 = vld [vmem:[#allocation6 + $0x318] sm:$0xff]
    %v291 = vld [vmem:[#allocation6 + $0x320] sm:$0xff]
    %v292 = vld [vmem:[#allocation6 + $0x328] sm:$0xff]
    %v293 = vld [vmem:[#allocation6 + $0x330] sm:$0xff]
    %v294 = vld [vmem:[#allocation6 + $0x338] sm:$0xff]
    %v295 = vld [vmem:[#allocation6 + $0x340] sm:$0xff]
    %v296 = vld [vmem:[#allocation6 + $0x348] sm:$0xff]
    %v297 = vld [vmem:[#allocation6 + $0x350] sm:$0xff]
    %v298 = vld [vmem:[#allocation6 + $0x358] sm:$0xff]
    %v299 = vld [vmem:[#allocation6 + $0x360] sm:$0xff]
    %v300 = vld [vmem:[#allocation6 + $0x368] sm:$0xff]
    %v301 = vld [vmem:[#allocation6 + $0x370] sm:$0xff]
    %v302 = vld [vmem:[#allocation6 + $0x378] sm:$0xff]
    %v303 = vld [vmem:[#allocation6 + $0x380] sm:$0xff]
    %v304 = vld [vmem:[#allocation6 + $0x388] sm:$0xff]
    %v305 = vld [vmem:[#allocation6 + $0x390] sm:$0xff]
    %v306 = vld [vmem:[#allocation6 + $0x398] sm:$0xff]
    %v307 = vld [vmem:[#allocation6 + $0x3a0] sm:$0xff]
    %v308 = vld [vmem:[#allocation6 + $0x3a8] sm:$0xff]
    %v309 = vld [vmem:[#allocation6 + $0x3b0] sm:$0xff]
    %v310 = vld [vmem:[#allocation6 + $0x3b8] sm:$0xff]
    %v311 = vld [vmem:[#allocation6 + $0x3c0] sm:$0xff]
    %v312 = vld [vmem:[#allocation6 + $0x3c8] sm:$0xff]
    %v313 = vld [vmem:[#allocation6 + $0x3d0] sm:$0xff]
    %v314 = vld [vmem:[#allocation6 + $0x3d8] sm:$0xff]
    %v315 = vld [vmem:[#allocation6 + $0x3e0] sm:$0xff]
    %v316 = vld [vmem:[#allocation6 + $0x3e8] sm:$0xff]
    %v317 = vld [vmem:[#allocation6 + $0x3f0] sm:$0xff]
    %v318 = vld [vmem:[#allocation6 + $0x3f8] sm:$0xff]
    %v319 = vld [vmem:[#allocation2] sm:$0xff]
    %v321 = vrot.slane %v319, 1
    %v322 = vrot.slane %v319, 2
    %v323 = vrot.slane %v319, 3
    %v324 = vrot.slane %v319, 4
    %v325 = vrot.slane %v319, 5
    %v326 = vrot.slane %v319, 6
    %v327 = vrot.slane %v319, 7
    %v328 = vperm.slane %v319, 0
    %v329 = vperm.slane %v321, 0
    %v330 = vperm.slane %v322, 0
    %v331 = vperm.slane %v323, 0
    %v332 = vperm.slane %v324, 0
    %v333 = vperm.slane %v325, 0
    %v334 = vperm.slane %v326, 0
    %v335 = vperm.slane %v327, 0
    %v344 = vmul.f32 %v191, %v328
    %v345 = vmul.f32 %v192, %v328
    %v346 = vmul.f32 %v193, %v328
    %v347 = vmul.f32 %v194, %v328
    %v348 = vmul.f32 %v195, %v328
    %v349 = vmul.f32 %v196, %v328
    %v350 = vmul.f32 %v197, %v328
    %v351 = vmul.f32 %v198, %v328
    %v352 = vmul.f32 %v199, %v328
    %v353 = vmul.f32 %v200, %v328
    %v354 = vmul.f32 %v201, %v328
    %v355 = vmul.f32 %v202, %v328
    %v356 = vmul.f32 %v203, %v328
    %v357 = vmul.f32 %v204, %v328
    %v358 = vmul.f32 %v205, %v328
    %v359 = vmul.f32 %v206, %v328
    %v360 = vmul.f32 %v207, %v329
    %v361 = vmul.f32 %v208, %v329
    %v362 = vmul.f32 %v209, %v329
    %v363 = vmul.f32 %v210, %v329
    %v364 = vmul.f32 %v211, %v329
    %v365 = vmul.f32 %v212, %v329
    %v366 = vmul.f32 %v213, %v329
    %v367 = vmul.f32 %v214, %v329
    %v368 = vmul.f32 %v215, %v329
    %v369 = vmul.f32 %v216, %v329
    %v370 = vmul.f32 %v217, %v329
    %v371 = vmul.f32 %v218, %v329
    %v372 = vmul.f32 %v219, %v329
    %v373 = vmul.f32 %v220, %v329
    %v374 = vmul.f32 %v221, %v329
    %v375 = vmul.f32 %v222, %v329
    %v376 = vmul.f32 %v223, %v330
    %v377 = vmul.f32 %v224, %v330
    %v378 = vmul.f32 %v225, %v330
    %v379 = vmul.f32 %v226, %v330
    %v380 = vmul.f32 %v227, %v330
    %v381 = vmul.f32 %v228, %v330
    %v382 = vmul.f32 %v229, %v330
    %v383 = vmul.f32 %v230, %v330
    %v384 = vmul.f32 %v231, %v330
    %v385 = vmul.f32 %v232, %v330
    %v386 = vmul.f32 %v233, %v330
    %v387 = vmul.f32 %v234, %v330
    %v388 = vmul.f32 %v235, %v330
    %v389 = vmul.f32 %v236, %v330
    %v390 = vmul.f32 %v237, %v330
    %v391 = vmul.f32 %v238, %v330
    %v392 = vmul.f32 %v239, %v331
    %v393 = vmul.f32 %v240, %v331
    %v394 = vmul.f32 %v241, %v331
    %v395 = vmul.f32 %v242, %v331
    %v396 = vmul.f32 %v243, %v331
    %v397 = vmul.f32 %v244, %v331
    %v398 = vmul.f32 %v245, %v331
    %v399 = vmul.f32 %v246, %v331
    %v400 = vmul.f32 %v247, %v331
    %v401 = vmul.f32 %v248, %v331
    %v402 = vmul.f32 %v249, %v331
    %v403 = vmul.f32 %v250, %v331
    %v404 = vmul.f32 %v251, %v331
    %v405 = vmul.f32 %v252, %v331
    %v406 = vmul.f32 %v253, %v331
    %v407 = vmul.f32 %v254, %v331
    %v408 = vmul.f32 %v255, %v332
    %v409 = vmul.f32 %v256, %v332
    %v410 = vmul.f32 %v257, %v332
    %v411 = vmul.f32 %v258, %v332
    %v412 = vmul.f32 %v259, %v332
    %v413 = vmul.f32 %v260, %v332
    %v414 = vmul.f32 %v261, %v332
    %v415 = vmul.f32 %v262, %v332
    %v416 = vmul.f32 %v263, %v332
    %v417 = vmul.f32 %v264, %v332
    %v418 = vmul.f32 %v265, %v332
    %v419 = vmul.f32 %v266, %v332
    %v420 = vmul.f32 %v267, %v332
    %v421 = vmul.f32 %v268, %v332
    %v422 = vmul.f32 %v269, %v332
    %v423 = vmul.f32 %v270, %v332
    %v424 = vmul.f32 %v271, %v333
    %v425 = vmul.f32 %v272, %v333
    %v426 = vmul.f32 %v273, %v333
    %v427 = vmul.f32 %v274, %v333
    %v428 = vmul.f32 %v275, %v333
    %v429 = vmul.f32 %v276, %v333
    %v430 = vmul.f32 %v277, %v333
    %v431 = vmul.f32 %v278, %v333
    %v432 = vmul.f32 %v279, %v333
    %v433 = vmul.f32 %v280, %v333
    %v434 = vmul.f32 %v281, %v333
    %v435 = vmul.f32 %v282, %v333
    %v436 = vmul.f32 %v283, %v333
    %v437 = vmul.f32 %v284, %v333
    %v438 = vmul.f32 %v285, %v333
    %v439 = vmul.f32 %v286, %v333
    %v440 = vmul.f32 %v287, %v334
    %v441 = vmul.f32 %v288, %v334
    %v442 = vmul.f32 %v289, %v334
    %v443 = vmul.f32 %v290, %v334
    %v444 = vmul.f32 %v291, %v334
    %v445 = vmul.f32 %v292, %v334
    %v446 = vmul.f32 %v293, %v334
    %v447 = vmul.f32 %v294, %v334
    %v448 = vmul.f32 %v295, %v334
    %v449 = vmul.f32 %v296, %v334
    %v450 = vmul.f32 %v297, %v334
    %v451 = vmul.f32 %v298, %v334
    %v452 = vmul.f32 %v299, %v334
    %v453 = vmul.f32 %v300, %v334
    %v454 = vmul.f32 %v301, %v334
    %v455 = vmul.f32 %v302, %v334
    %v456 = vmul.f32 %v303, %v335
    %v457 = vmul.f32 %v304, %v335
    %v458 = vmul.f32 %v305, %v335
    %v459 = vmul.f32 %v306, %v335
    %v460 = vmul.f32 %v307, %v335
    %v461 = vmul.f32 %v308, %v335
    %v462 = vmul.f32 %v309, %v335
    %v463 = vmul.f32 %v310, %v335
    %v464 = vmul.f32 %v311, %v335
    %v465 = vmul.f32 %v312, %v335
    %v466 = vmul.f32 %v313, %v335
    %v467 = vmul.f32 %v314, %v335
    %v468 = vmul.f32 %v315, %v335
    %v469 = vmul.f32 %v316, %v335
    %v470 = vmul.f32 %v317, %v335
    %v471 = vmul.f32 %v318, %v335
    %472 = vadd.xlane.f32.xlu0 %v344
    %v473 = vpop.xlane.xlu0 %472
    %474 = vadd.xlane.f32.xlu0 %v345
    %v475 = vpop.xlane.xlu0 %474
    %476 = vadd.xlane.f32.xlu0 %v346
    %v477 = vpop.xlane.xlu0 %476
    %478 = vadd.xlane.f32.xlu0 %v347
    %v479 = vpop.xlane.xlu0 %478
    %480 = vadd.xlane.f32.xlu0 %v348
    %v481 = vpop.xlane.xlu0 %480
    %482 = vadd.xlane.f32.xlu0 %v349
    %v483 = vpop.xlane.xlu0 %482
    %484 = vadd.xlane.f32.xlu0 %v350
    %v485 = vpop.xlane.xlu0 %484
    %486 = vadd.xlane.f32.xlu0 %v351
    %v487 = vpop.xlane.xlu0 %486
    %488 = vadd.xlane.f32.xlu0 %v352
    %v489 = vpop.xlane.xlu0 %488
    %490 = vadd.xlane.f32.xlu0 %v353
    %v491 = vpop.xlane.xlu0 %490
    %492 = vadd.xlane.f32.xlu0 %v354
    %v493 = vpop.xlane.xlu0 %492
    %494 = vadd.xlane.f32.xlu0 %v355
    %v495 = vpop.xlane.xlu0 %494
    %496 = vadd.xlane.f32.xlu0 %v356
    %v497 = vpop.xlane.xlu0 %496
    %498 = vadd.xlane.f32.xlu0 %v357
    %v499 = vpop.xlane.xlu0 %498
    %500 = vadd.xlane.f32.xlu0 %v358
    %v501 = vpop.xlane.xlu0 %500
    %502 = vadd.xlane.f32.xlu0 %v359
    %v503 = vpop.xlane.xlu0 %502
    %504 = vadd.xlane.f32.xlu0 %v360
    %v505 = vpop.xlane.xlu0 %504
    %506 = vadd.xlane.f32.xlu0 %v361
    %v507 = vpop.xlane.xlu0 %506
    %508 = vadd.xlane.f32.xlu0 %v362
    %v509 = vpop.xlane.xlu0 %508
    %510 = vadd.xlane.f32.xlu0 %v363
    %v511 = vpop.xlane.xlu0 %510
    %512 = vadd.xlane.f32.xlu0 %v364
    %v513 = vpop.xlane.xlu0 %512
    %514 = vadd.xlane.f32.xlu0 %v365
    %v515 = vpop.xlane.xlu0 %514
    %516 = vadd.xlane.f32.xlu0 %v366
    %v517 = vpop.xlane.xlu0 %516
    %518 = vadd.xlane.f32.xlu0 %v367
    %v519 = vpop.xlane.xlu0 %518
    %520 = vadd.xlane.f32.xlu0 %v368
    %v521 = vpop.xlane.xlu0 %520
    %522 = vadd.xlane.f32.xlu0 %v369
    %v523 = vpop.xlane.xlu0 %522
    %524 = vadd.xlane.f32.xlu0 %v370
    %v525 = vpop.xlane.xlu0 %524
    %526 = vadd.xlane.f32.xlu0 %v371
    %v527 = vpop.xlane.xlu0 %526
    %528 = vadd.xlane.f32.xlu0 %v372
    %v529 = vpop.xlane.xlu0 %528
    %530 = vadd.xlane.f32.xlu0 %v373
    %v531 = vpop.xlane.xlu0 %530
    %532 = vadd.xlane.f32.xlu0 %v374
    %v533 = vpop.xlane.xlu0 %532
    %534 = vadd.xlane.f32.xlu0 %v375
    %v535 = vpop.xlane.xlu0 %534
    %536 = vadd.xlane.f32.xlu0 %v376
    %v537 = vpop.xlane.xlu0 %536
    %538 = vadd.xlane.f32.xlu0 %v377
    %v539 = vpop.xlane.xlu0 %538
    %540 = vadd.xlane.f32.xlu0 %v378
    %v541 = vpop.xlane.xlu0 %540
    %542 = vadd.xlane.f32.xlu0 %v379
    %v543 = vpop.xlane.xlu0 %542
    %544 = vadd.xlane.f32.xlu0 %v380
    %v545 = vpop.xlane.xlu0 %544
    %546 = vadd.xlane.f32.xlu0 %v381
    %v547 = vpop.xlane.xlu0 %546
    %548 = vadd.xlane.f32.xlu0 %v382
    %v549 = vpop.xlane.xlu0 %548
    %550 = vadd.xlane.f32.xlu0 %v383
    %v551 = vpop.xlane.xlu0 %550
    %552 = vadd.xlane.f32.xlu0 %v384
    %v553 = vpop.xlane.xlu0 %552
    %554 = vadd.xlane.f32.xlu0 %v385
    %v555 = vpop.xlane.xlu0 %554
    %556 = vadd.xlane.f32.xlu0 %v386
    %v557 = vpop.xlane.xlu0 %556
    %558 = vadd.xlane.f32.xlu0 %v387
    %v559 = vpop.xlane.xlu0 %558
    %560 = vadd.xlane.f32.xlu0 %v388
    %v561 = vpop.xlane.xlu0 %560
    %562 = vadd.xlane.f32.xlu0 %v389
    %v563 = vpop.xlane.xlu0 %562
    %564 = vadd.xlane.f32.xlu0 %v390
    %v565 = vpop.xlane.xlu0 %564
    %566 = vadd.xlane.f32.xlu0 %v391
    %v567 = vpop.xlane.xlu0 %566
    %568 = vadd.xlane.f32.xlu0 %v392
    %v569 = vpop.xlane.xlu0 %568
    %570 = vadd.xlane.f32.xlu0 %v393
    %v571 = vpop.xlane.xlu0 %570
    %572 = vadd.xlane.f32.xlu0 %v394
    %v573 = vpop.xlane.xlu0 %572
    %574 = vadd.xlane.f32.xlu0 %v395
    %v575 = vpop.xlane.xlu0 %574
    %576 = vadd.xlane.f32.xlu0 %v396
    %v577 = vpop.xlane.xlu0 %576
    %578 = vadd.xlane.f32.xlu0 %v397
    %v579 = vpop.xlane.xlu0 %578
    %580 = vadd.xlane.f32.xlu0 %v398
    %v581 = vpop.xlane.xlu0 %580
    %582 = vadd.xlane.f32.xlu0 %v399
    %v583 = vpop.xlane.xlu0 %582
    %584 = vadd.xlane.f32.xlu0 %v400
    %v585 = vpop.xlane.xlu0 %584
    %586 = vadd.xlane.f32.xlu0 %v401
    %v587 = vpop.xlane.xlu0 %586
    %588 = vadd.xlane.f32.xlu0 %v402
    %v589 = vpop.xlane.xlu0 %588
    %590 = vadd.xlane.f32.xlu0 %v403
    %v591 = vpop.xlane.xlu0 %590
    %592 = vadd.xlane.f32.xlu0 %v404
    %v593 = vpop.xlane.xlu0 %592
    %594 = vadd.xlane.f32.xlu0 %v405
    %v595 = vpop.xlane.xlu0 %594
    %596 = vadd.xlane.f32.xlu0 %v406
    %v597 = vpop.xlane.xlu0 %596
    %598 = vadd.xlane.f32.xlu0 %v407
    %v599 = vpop.xlane.xlu0 %598
    %600 = vadd.xlane.f32.xlu0 %v408
    %v601 = vpop.xlane.xlu0 %600
    %602 = vadd.xlane.f32.xlu0 %v409
    %v603 = vpop.xlane.xlu0 %602
    %604 = vadd.xlane.f32.xlu0 %v410
    %v605 = vpop.xlane.xlu0 %604
    %606 = vadd.xlane.f32.xlu0 %v411
    %v607 = vpop.xlane.xlu0 %606
    %608 = vadd.xlane.f32.xlu0 %v412
    %v609 = vpop.xlane.xlu0 %608
    %610 = vadd.xlane.f32.xlu0 %v413
    %v611 = vpop.xlane.xlu0 %610
    %612 = vadd.xlane.f32.xlu0 %v414
    %v613 = vpop.xlane.xlu0 %612
    %614 = vadd.xlane.f32.xlu0 %v415
    %v615 = vpop.xlane.xlu0 %614
    %616 = vadd.xlane.f32.xlu0 %v416
    %v617 = vpop.xlane.xlu0 %616
    %618 = vadd.xlane.f32.xlu0 %v417
    %v619 = vpop.xlane.xlu0 %618
    %620 = vadd.xlane.f32.xlu0 %v418
    %v621 = vpop.xlane.xlu0 %620
    %622 = vadd.xlane.f32.xlu0 %v419
    %v623 = vpop.xlane.xlu0 %622
    %624 = vadd.xlane.f32.xlu0 %v420
    %v625 = vpop.xlane.xlu0 %624
    %626 = vadd.xlane.f32.xlu0 %v421
    %v627 = vpop.xlane.xlu0 %626
    %628 = vadd.xlane.f32.xlu0 %v422
    %v629 = vpop.xlane.xlu0 %628
    %630 = vadd.xlane.f32.xlu0 %v423
    %v631 = vpop.xlane.xlu0 %630
    %632 = vadd.xlane.f32.xlu0 %v424
    %v633 = vpop.xlane.xlu0 %632
    %634 = vadd.xlane.f32.xlu0 %v425
    %v635 = vpop.xlane.xlu0 %634
    %636 = vadd.xlane.f32.xlu0 %v426
    %v637 = vpop.xlane.xlu0 %636
    %638 = vadd.xlane.f32.xlu0 %v427
    %v639 = vpop.xlane.xlu0 %638
    %640 = vadd.xlane.f32.xlu0 %v428
    %v641 = vpop.xlane.xlu0 %640
    %642 = vadd.xlane.f32.xlu0 %v429
    %v643 = vpop.xlane.xlu0 %642
    %644 = vadd.xlane.f32.xlu0 %v430
    %v645 = vpop.xlane.xlu0 %644
    %646 = vadd.xlane.f32.xlu0 %v431
    %v647 = vpop.xlane.xlu0 %646
    %648 = vadd.xlane.f32.xlu0 %v432
    %v649 = vpop.xlane.xlu0 %648
    %650 = vadd.xlane.f32.xlu0 %v433
    %v651 = vpop.xlane.xlu0 %650
    %652 = vadd.xlane.f32.xlu0 %v434
    %v653 = vpop.xlane.xlu0 %652
    %654 = vadd.xlane.f32.xlu0 %v435
    %v655 = vpop.xlane.xlu0 %654
    %656 = vadd.xlane.f32.xlu0 %v436
    %v657 = vpop.xlane.xlu0 %656
    %658 = vadd.xlane.f32.xlu0 %v437
    %v659 = vpop.xlane.xlu0 %658
    %660 = vadd.xlane.f32.xlu0 %v438
    %v661 = vpop.xlane.xlu0 %660
    %662 = vadd.xlane.f32.xlu0 %v439
    %v663 = vpop.xlane.xlu0 %662
    %664 = vadd.xlane.f32.xlu0 %v440
    %v665 = vpop.xlane.xlu0 %664
    %666 = vadd.xlane.f32.xlu0 %v441
    %v667 = vpop.xlane.xlu0 %666
    %668 = vadd.xlane.f32.xlu0 %v442
    %v669 = vpop.xlane.xlu0 %668
    %670 = vadd.xlane.f32.xlu0 %v443
    %v671 = vpop.xlane.xlu0 %670
    %672 = vadd.xlane.f32.xlu0 %v444
    %v673 = vpop.xlane.xlu0 %672
    %674 = vadd.xlane.f32.xlu0 %v445
    %v675 = vpop.xlane.xlu0 %674
    %676 = vadd.xlane.f32.xlu0 %v446
    %v677 = vpop.xlane.xlu0 %676
    %678 = vadd.xlane.f32.xlu0 %v447
    %v679 = vpop.xlane.xlu0 %678
    %680 = vadd.xlane.f32.xlu0 %v448
    %v681 = vpop.xlane.xlu0 %680
    %682 = vadd.xlane.f32.xlu0 %v449
    %v683 = vpop.xlane.xlu0 %682
    %684 = vadd.xlane.f32.xlu0 %v450
    %v685 = vpop.xlane.xlu0 %684
    %686 = vadd.xlane.f32.xlu0 %v451
    %v687 = vpop.xlane.xlu0 %686
    %688 = vadd.xlane.f32.xlu0 %v452
    %v689 = vpop.xlane.xlu0 %688
    %690 = vadd.xlane.f32.xlu0 %v453
    %v691 = vpop.xlane.xlu0 %690
    %692 = vadd.xlane.f32.xlu0 %v454
    %v693 = vpop.xlane.xlu0 %692
    %694 = vadd.xlane.f32.xlu0 %v455
    %v695 = vpop.xlane.xlu0 %694
    %696 = vadd.xlane.f32.xlu0 %v456
    %v697 = vpop.xlane.xlu0 %696
    %698 = vadd.xlane.f32.xlu0 %v457
    %v699 = vpop.xlane.xlu0 %698
    %700 = vadd.xlane.f32.xlu0 %v458
    %v701 = vpop.xlane.xlu0 %700
    %702 = vadd.xlane.f32.xlu0 %v459
    %v703 = vpop.xlane.xlu0 %702
    %704 = vadd.xlane.f32.xlu0 %v460
    %v705 = vpop.xlane.xlu0 %704
    %706 = vadd.xlane.f32.xlu0 %v461
    %v707 = vpop.xlane.xlu0 %706
    %708 = vadd.xlane.f32.xlu0 %v462
    %v709 = vpop.xlane.xlu0 %708
    %710 = vadd.xlane.f32.xlu0 %v463
    %v711 = vpop.xlane.xlu0 %710
    %712 = vadd.xlane.f32.xlu0 %v464
    %v713 = vpop.xlane.xlu0 %712
    %714 = vadd.xlane.f32.xlu0 %v465
    %v715 = vpop.xlane.xlu0 %714
    %716 = vadd.xlane.f32.xlu0 %v466
    %v717 = vpop.xlane.xlu0 %716
    %718 = vadd.xlane.f32.xlu0 %v467
    %v719 = vpop.xlane.xlu0 %718
    %720 = vadd.xlane.f32.xlu0 %v468
    %v721 = vpop.xlane.xlu0 %720
    %722 = vadd.xlane.f32.xlu0 %v469
    %v723 = vpop.xlane.xlu0 %722
    %724 = vadd.xlane.f32.xlu0 %v470
    %v725 = vpop.xlane.xlu0 %724
    %726 = vadd.xlane.f32.xlu0 %v471
    %v727 = vpop.xlane.xlu0 %726
    %s728 = smul.u32 0, 128
    %v729 = vlaneseq
    %v730 = vand.u32 %v729, 127
    %v731 = vstv %s728
    %v732 = vadd.s32 %v731, %v730
    %vm733 = vcmp.lt.s32.totalorder %v732, 8
    %v862 = vperm.slane %v473, %v730
    %v863 = vadd.s32 %v730, 4294967288
    %v864 = vperm.slane %v475, %v863
    %vm865 = vcmask 130112
    %v866 = vsel %vm865, %v864, %v862
    %v867 = vadd.s32 %v730, 4294967280
    %v868 = vperm.slane %v477, %v867
    %vm869 = vcmask 195712
    %v870 = vsel %vm869, %v868, %v866
    %v871 = vadd.s32 %v730, 4294967272
    %v872 = vperm.slane %v479, %v871
    %vm873 = vcmask 261312
    %v874 = vsel %vm873, %v872, %v870
    %v875 = vadd.s32 %v730, 4294967264
    %v876 = vperm.slane %v481, %v875
    %vm877 = vcmask 326912
    %v878 = vsel %vm877, %v876, %v874
    %v879 = vadd.s32 %v730, 4294967256
    %v880 = vperm.slane %v483, %v879
    %vm881 = vcmask 392512
    %v882 = vsel %vm881, %v880, %v878
    %v883 = vadd.s32 %v730, 4294967248
    %v884 = vperm.slane %v485, %v883
    %vm885 = vcmask 458112
    %v886 = vsel %vm885, %v884, %v882
    %v887 = vadd.s32 %v730, 4294967240
    %v888 = vperm.slane %v487, %v887
    %vm889 = vcmask 523712
    %v890 = vsel %vm889, %v888, %v886
    %v891 = vadd.s32 %v730, 4294967232
    %v892 = vperm.slane %v489, %v891
    %vm893 = vcmask 589312
    %v894 = vsel %vm893, %v892, %v890
    %v895 = vadd.s32 %v730, 4294967224
    %v896 = vperm.slane %v491, %v895
    %vm897 = vcmask 654912
    %v898 = vsel %vm897, %v896, %v894
    %v899 = vadd.s32 %v730, 4294967216
    %v900 = vperm.slane %v493, %v899
    %vm901 = vcmask 720512
    %v902 = vsel %vm901, %v900, %v898
    %v903 = vadd.s32 %v730, 4294967208
    %v904 = vperm.slane %v495, %v903
    %vm905 = vcmask 786112
    %v906 = vsel %vm905, %v904, %v902
    %v907 = vadd.s32 %v730, 4294967200
    %v908 = vperm.slane %v497, %v907
    %vm909 = vcmask 851712
    %v910 = vsel %vm909, %v908, %v906
    %v911 = vadd.s32 %v730, 4294967192
    %v912 = vperm.slane %v499, %v911
    %vm913 = vcmask 917312
    %v914 = vsel %vm913, %v912, %v910
    %v915 = vadd.s32 %v730, 4294967184
    %v916 = vperm.slane %v501, %v915
    %vm917 = vcmask 982912
    %v918 = vsel %vm917, %v916, %v914
    %v919 = vadd.s32 %v730, 4294967176
    %v920 = vperm.slane %v503, %v919
    %vm921 = vcmask 1048512
    %v922 = vsel %vm921, %v920, %v918
    %v923 = vperm.slane %v505, %v730
    %v924 = vperm.slane %v507, %v863
    %v925 = vsel %vm865, %v924, %v923
    %v926 = vperm.slane %v509, %v867
    %v927 = vsel %vm869, %v926, %v925
    %v928 = vperm.slane %v511, %v871
    %v929 = vsel %vm873, %v928, %v927
    %v930 = vperm.slane %v513, %v875
    %v931 = vsel %vm877, %v930, %v929
    %v932 = vperm.slane %v515, %v879
    %v933 = vsel %vm881, %v932, %v931
    %v934 = vperm.slane %v517, %v883
    %v935 = vsel %vm885, %v934, %v933
    %v936 = vperm.slane %v519, %v887
    %v937 = vsel %vm889, %v936, %v935
    %v938 = vperm.slane %v521, %v891
    %v939 = vsel %vm893, %v938, %v937
    %v940 = vperm.slane %v523, %v895
    %v941 = vsel %vm897, %v940, %v939
    %v942 = vperm.slane %v525, %v899
    %v943 = vsel %vm901, %v942, %v941
    %v944 = vperm.slane %v527, %v903
    %v945 = vsel %vm905, %v944, %v943
    %v946 = vperm.slane %v529, %v907
    %v947 = vsel %vm909, %v946, %v945
    %v948 = vperm.slane %v531, %v911
    %v949 = vsel %vm913, %v948, %v947
    %v950 = vperm.slane %v533, %v915
    %v951 = vsel %vm917, %v950, %v949
    %v952 = vperm.slane %v535, %v919
    %v953 = vsel %vm921, %v952, %v951
    %v954 = vperm.slane %v537, %v730
    %v955 = vperm.slane %v539, %v863
    %v956 = vsel %vm865, %v955, %v954
    %v957 = vperm.slane %v541, %v867
    %v958 = vsel %vm869, %v957, %v956
    %v959 = vperm.slane %v543, %v871
    %v960 = vsel %vm873, %v959, %v958
    %v961 = vperm.slane %v545, %v875
    %v962 = vsel %vm877, %v961, %v960
    %v963 = vperm.slane %v547, %v879
    %v964 = vsel %vm881, %v963, %v962
    %v965 = vperm.slane %v549, %v883
    %v966 = vsel %vm885, %v965, %v964
    %v967 = vperm.slane %v551, %v887
    %v968 = vsel %vm889, %v967, %v966
    %v969 = vperm.slane %v553, %v891
    %v970 = vsel %vm893, %v969, %v968
    %v971 = vperm.slane %v555, %v895
    %v972 = vsel %vm897, %v971, %v970
    %v973 = vperm.slane %v557, %v899
    %v974 = vsel %vm901, %v973, %v972
    %v975 = vperm.slane %v559, %v903
    %v976 = vsel %vm905, %v975, %v974
    %v977 = vperm.slane %v561, %v907
    %v978 = vsel %vm909, %v977, %v976
    %v979 = vperm.slane %v563, %v911
    %v980 = vsel %vm913, %v979, %v978
    %v981 = vperm.slane %v565, %v915
    %v982 = vsel %vm917, %v981, %v980
    %v983 = vperm.slane %v567, %v919
    %v984 = vsel %vm921, %v983, %v982
    %v985 = vperm.slane %v569, %v730
    %v986 = vperm.slane %v571, %v863
    %v987 = vsel %vm865, %v986, %v985
    %v988 = vperm.slane %v573, %v867
    %v989 = vsel %vm869, %v988, %v987
    %v990 = vperm.slane %v575, %v871
    %v991 = vsel %vm873, %v990, %v989
    %v992 = vperm.slane %v577, %v875
    %v993 = vsel %vm877, %v992, %v991
    %v994 = vperm.slane %v579, %v879
    %v995 = vsel %vm881, %v994, %v993
    %v996 = vperm.slane %v581, %v883
    %v997 = vsel %vm885, %v996, %v995
    %v998 = vperm.slane %v583, %v887
    %v999 = vsel %vm889, %v998, %v997
    %v1000 = vperm.slane %v585, %v891
    %v1001 = vsel %vm893, %v1000, %v999
    %v1002 = vperm.slane %v587, %v895
    %v1003 = vsel %vm897, %v1002, %v1001
    %v1004 = vperm.slane %v589, %v899
    %v1005 = vsel %vm901, %v1004, %v1003
    %v1006 = vperm.slane %v591, %v903
    %v1007 = vsel %vm905, %v1006, %v1005
    %v1008 = vperm.slane %v593, %v907
    %v1009 = vsel %vm909, %v1008, %v1007
    %v1010 = vperm.slane %v595, %v911
    %v1011 = vsel %vm913, %v1010, %v1009
    %v1012 = vperm.slane %v597, %v915
    %v1013 = vsel %vm917, %v1012, %v1011
    %v1014 = vperm.slane %v599, %v919
    %v1015 = vsel %vm921, %v1014, %v1013
    %v1016 = vperm.slane %v601, %v730
    %v1017 = vperm.slane %v603, %v863
    %v1018 = vsel %vm865, %v1017, %v1016
    %v1019 = vperm.slane %v605, %v867
    %v1020 = vsel %vm869, %v1019, %v1018
    %v1021 = vperm.slane %v607, %v871
    %v1022 = vsel %vm873, %v1021, %v1020
    %v1023 = vperm.slane %v609, %v875
    %v1024 = vsel %vm877, %v1023, %v1022
    %v1025 = vperm.slane %v611, %v879
    %v1026 = vsel %vm881, %v1025, %v1024
    %v1027 = vperm.slane %v613, %v883
    %v1028 = vsel %vm885, %v1027, %v1026
    %v1029 = vperm.slane %v615, %v887
    %v1030 = vsel %vm889, %v1029, %v1028
    %v1031 = vperm.slane %v617, %v891
    %v1032 = vsel %vm893, %v1031, %v1030
    %v1033 = vperm.slane %v619, %v895
    %v1034 = vsel %vm897, %v1033, %v1032
    %v1035 = vperm.slane %v621, %v899
    %v1036 = vsel %vm901, %v1035, %v1034
    %v1037 = vperm.slane %v623, %v903
    %v1038 = vsel %vm905, %v1037, %v1036
    %v1039 = vperm.slane %v625, %v907
    %v1040 = vsel %vm909, %v1039, %v1038
    %v1041 = vperm.slane %v627, %v911
    %v1042 = vsel %vm913, %v1041, %v1040
    %v1043 = vperm.slane %v629, %v915
    %v1044 = vsel %vm917, %v1043, %v1042
    %v1045 = vperm.slane %v631, %v919
    %v1046 = vsel %vm921, %v1045, %v1044
    %v1047 = vperm.slane %v633, %v730
    %v1048 = vperm.slane %v635, %v863
    %v1049 = vsel %vm865, %v1048, %v1047
    %v1050 = vperm.slane %v637, %v867
    %v1051 = vsel %vm869, %v1050, %v1049
    %v1052 = vperm.slane %v639, %v871
    %v1053 = vsel %vm873, %v1052, %v1051
    %v1054 = vperm.slane %v641, %v875
    %v1055 = vsel %vm877, %v1054, %v1053
    %v1056 = vperm.slane %v643, %v879
    %v1057 = vsel %vm881, %v1056, %v1055
    %v1058 = vperm.slane %v645, %v883
    %v1059 = vsel %vm885, %v1058, %v1057
    %v1060 = vperm.slane %v647, %v887
    %v1061 = vsel %vm889, %v1060, %v1059
    %v1062 = vperm.slane %v649, %v891
    %v1063 = vsel %vm893, %v1062, %v1061
    %v1064 = vperm.slane %v651, %v895
    %v1065 = vsel %vm897, %v1064, %v1063
    %v1066 = vperm.slane %v653, %v899
    %v1067 = vsel %vm901, %v1066, %v1065
    %v1068 = vperm.slane %v655, %v903
    %v1069 = vsel %vm905, %v1068, %v1067
    %v1070 = vperm.slane %v657, %v907
    %v1071 = vsel %vm909, %v1070, %v1069
    %v1072 = vperm.slane %v659, %v911
    %v1073 = vsel %vm913, %v1072, %v1071
    %v1074 = vperm.slane %v661, %v915
    %v1075 = vsel %vm917, %v1074, %v1073
    %v1076 = vperm.slane %v663, %v919
    %v1077 = vsel %vm921, %v1076, %v1075
    %v1078 = vperm.slane %v665, %v730
    %v1079 = vperm.slane %v667, %v863
    %v1080 = vsel %vm865, %v1079, %v1078
    %v1081 = vperm.slane %v669, %v867
    %v1082 = vsel %vm869, %v1081, %v1080
    %v1083 = vperm.slane %v671, %v871
    %v1084 = vsel %vm873, %v1083, %v1082
    %v1085 = vperm.slane %v673, %v875
    %v1086 = vsel %vm877, %v1085, %v1084
    %v1087 = vperm.slane %v675, %v879
    %v1088 = vsel %vm881, %v1087, %v1086
    %v1089 = vperm.slane %v677, %v883
    %v1090 = vsel %vm885, %v1089, %v1088
    %v1091 = vperm.slane %v679, %v887
    %v1092 = vsel %vm889, %v1091, %v1090
    %v1093 = vperm.slane %v681, %v891
    %v1094 = vsel %vm893, %v1093, %v1092
    %v1095 = vperm.slane %v683, %v895
    %v1096 = vsel %vm897, %v1095, %v1094
    %v1097 = vperm.slane %v685, %v899
    %v1098 = vsel %vm901, %v1097, %v1096
    %v1099 = vperm.slane %v687, %v903
    %v1100 = vsel %vm905, %v1099, %v1098
    %v1101 = vperm.slane %v689, %v907
    %v1102 = vsel %vm909, %v1101, %v1100
    %v1103 = vperm.slane %v691, %v911
    %v1104 = vsel %vm913, %v1103, %v1102
    %v1105 = vperm.slane %v693, %v915
    %v1106 = vsel %vm917, %v1105, %v1104
    %v1107 = vperm.slane %v695, %v919
    %v1108 = vsel %vm921, %v1107, %v1106
    %v1109 = vperm.slane %v697, %v730
    %v1110 = vperm.slane %v699, %v863
    %v1111 = vsel %vm865, %v1110, %v1109
    %v1112 = vperm.slane %v701, %v867
    %v1113 = vsel %vm869, %v1112, %v1111
    %v1114 = vperm.slane %v703, %v871
    %v1115 = vsel %vm873, %v1114, %v1113
    %v1116 = vperm.slane %v705, %v875
    %v1117 = vsel %vm877, %v1116, %v1115
    %v1118 = vperm.slane %v707, %v879
    %v1119 = vsel %vm881, %v1118, %v1117
    %v1120 = vperm.slane %v709, %v883
    %v1121 = vsel %vm885, %v1120, %v1119
    %v1122 = vperm.slane %v711, %v887
    %v1123 = vsel %vm889, %v1122, %v1121
    %v1124 = vperm.slane %v713, %v891
    %v1125 = vsel %vm893, %v1124, %v1123
    %v1126 = vperm.slane %v715, %v895
    %v1127 = vsel %vm897, %v1126, %v1125
    %v1128 = vperm.slane %v717, %v899
    %v1129 = vsel %vm901, %v1128, %v1127
    %v1130 = vperm.slane %v719, %v903
    %v1131 = vsel %vm905, %v1130, %v1129
    %v1132 = vperm.slane %v721, %v907
    %v1133 = vsel %vm909, %v1132, %v1131
    %v1134 = vperm.slane %v723, %v911
    %v1135 = vsel %vm913, %v1134, %v1133
    %v1136 = vperm.slane %v725, %v915
    %v1137 = vsel %vm917, %v1136, %v1135
    %v1138 = vperm.slane %v727, %v919
    %v1139 = vsel %vm921, %v1138, %v1137
    %vm1140 = vcmask 1041409
    %v1141 = vsel %vm1140, %v953, %v922
    %vm1142 = vcmask 1042434
    %v1143 = vsel %vm1142, %v984, %v1141
    %vm1144 = vcmask 1043459
    %v1145 = vsel %vm1144, %v1015, %v1143
    %vm1146 = vcmask 1044484
    %v1147 = vsel %vm1146, %v1046, %v1145
    %vm1148 = vcmask 1045509
    %v1149 = vsel %vm1148, %v1077, %v1147
    %vm1150 = vcmask 1046534
    %v1151 = vsel %vm1150, %v1108, %v1149
    %vm1152 = vcmask 1047559
    %v1153 = vsel %vm1152, %v1139, %v1151
    %v1155 = vsel %vm733, %v1153, -1e+30
    %s1156 = sshra.s32 %s728, 7
    %s1157 = sand.u32 %s728, 127
    %s1158 = scalar_lea.vmem [#allocation19], %s1156
    %1159 = vst [vmem:[%s1158] sm:$0xff] %v1155
    %v1160 = vld [vmem:[#allocation3] sm:$0xff]
    %1161 = vmax.xlane.f32.xlu0 %v1155
    %v1162 = vpop.xlane.xlu0 %1161
    %v1163 = vmax.f32 %v1160, %v1162
    %v1164 = vsub.f32 %v1160, %v1163
    %v1165 = vmul.f32 %v1164, 1.442695
    %v1166 = vpow.pop %v1165
    %1168 = vset.pattern.permute.xlu0 0
    %1169 = vperm.xlu0 %1168, %v1163
    %v1170 = vpop.permute.xlu0 %1169
    %v1172 = vsub.f32 %v1155, %v1170
    %v1173 = vmul.f32 %v1172, 1.442695
    %v1174 = vpow.pop %v1173
    %v1175 = vld [vmem:[#allocation4] sm:$0xff]
    %v1176 = vmul.f32 %v1166, %v1175
    %1177 = vadd.xlane.f32.xlu0 %v1174
    %v1178 = vpop.xlane.xlu0 %1177
    %v1179 = vadd.f32 %v1176, %v1178
    %vm1180 = vcmask 7168
    %1181 = vst.msk [vmem:[#allocation4] sm:$0xff] %vm1180, %v1179
    %v1182 = vld [vmem:[#allocation5] sm:$0xff]
    %1184 = vset.pattern.permute.xlu0 0
    %1185 = vperm.xlu0 %1184, %v1166
    %v1186 = vpop.permute.xlu0 %1185
    %v1188 = vmul.f32 %v1186, %v1182
    %v1189 = vperm.slane %v1174, 0
    %v1190 = vlaneseq
    %v1191 = vshrl.u32 %v1190, 7
    %1193 = vset.pattern.permute.xlu0 %v1191
    %1194 = vperm.xlu0 %1193, %v1189
    %v1195 = vpop.permute.xlu0 %1194
    %v1196 = vlaneseq
    %v1197 = vshrl.u32 %v1196, 7
    %v1198 = vadd.s32 %v1197, 8
    %1199 = vset.pattern.permute.xlu0 %v1198
    %1200 = vperm.xlu0 %1199, %v1189
    %v1201 = vpop.permute.xlu0 %1200
    %v1202 = vlaneseq
    %v1203 = vshrl.u32 %v1202, 7
    %v1204 = vadd.s32 %v1203, 16
    %1205 = vset.pattern.permute.xlu0 %v1204
    %1206 = vperm.xlu0 %1205, %v1189
    %v1207 = vpop.permute.xlu0 %1206
    %v1208 = vlaneseq
    %v1209 = vshrl.u32 %v1208, 7
    %v1210 = vadd.s32 %v1209, 24
    %1211 = vset.pattern.permute.xlu0 %v1210
    %1212 = vperm.xlu0 %1211, %v1189
    %v1213 = vpop.permute.xlu0 %1212
    %v1214 = vlaneseq
    %v1215 = vshrl.u32 %v1214, 7
    %v1216 = vadd.s32 %v1215, 32
    %1217 = vset.pattern.permute.xlu0 %v1216
    %1218 = vperm.xlu0 %1217, %v1189
    %v1219 = vpop.permute.xlu0 %1218
    %v1220 = vlaneseq
    %v1221 = vshrl.u32 %v1220, 7
    %v1222 = vadd.s32 %v1221, 40
    %1223 = vset.pattern.permute.xlu0 %v1222
    %1224 = vperm.xlu0 %1223, %v1189
    %v1225 = vpop.permute.xlu0 %1224
    %v1226 = vlaneseq
    %v1227 = vshrl.u32 %v1226, 7
    %v1228 = vadd.s32 %v1227, 48
    %1229 = vset.pattern.permute.xlu0 %v1228
    %1230 = vperm.xlu0 %1229, %v1189
    %v1231 = vpop.permute.xlu0 %1230
    %v1232 = vlaneseq
    %v1233 = vshrl.u32 %v1232, 7
    %v1234 = vadd.s32 %v1233, 56
    %1235 = vset.pattern.permute.xlu0 %v1234
    %1236 = vperm.xlu0 %1235, %v1189
    %v1237 = vpop.permute.xlu0 %1236
    %v1238 = vlaneseq
    %v1239 = vshrl.u32 %v1238, 7
    %v1240 = vadd.s32 %v1239, 64
    %1241 = vset.pattern.permute.xlu0 %v1240
    %1242 = vperm.xlu0 %1241, %v1189
    %v1243 = vpop.permute.xlu0 %1242
    %v1244 = vlaneseq
    %v1245 = vshrl.u32 %v1244, 7
    %v1246 = vadd.s32 %v1245, 72
    %1247 = vset.pattern.permute.xlu0 %v1246
    %1248 = vperm.xlu0 %1247, %v1189
    %v1249 = vpop.permute.xlu0 %1248
    %v1250 = vlaneseq
    %v1251 = vshrl.u32 %v1250, 7
    %v1252 = vadd.s32 %v1251, 80
    %1253 = vset.pattern.permute.xlu0 %v1252
    %1254 = vperm.xlu0 %1253, %v1189
    %v1255 = vpop.permute.xlu0 %1254
    %v1256 = vlaneseq
    %v1257 = vshrl.u32 %v1256, 7
    %v1258 = vadd.s32 %v1257, 88
    %1259 = vset.pattern.permute.xlu0 %v1258
    %1260 = vperm.xlu0 %1259, %v1189
    %v1261 = vpop.permute.xlu0 %1260
    %v1262 = vlaneseq
    %v1263 = vshrl.u32 %v1262, 7
    %v1264 = vadd.s32 %v1263, 96
    %1265 = vset.pattern.permute.xlu0 %v1264
    %1266 = vperm.xlu0 %1265, %v1189
    %v1267 = vpop.permute.xlu0 %1266
    %v1268 = vlaneseq
    %v1269 = vshrl.u32 %v1268, 7
    %v1270 = vadd.s32 %v1269, 104
    %1271 = vset.pattern.permute.xlu0 %v1270
    %1272 = vperm.xlu0 %1271, %v1189
    %v1273 = vpop.permute.xlu0 %1272
    %v1274 = vlaneseq
    %v1275 = vshrl.u32 %v1274, 7
    %v1276 = vadd.s32 %v1275, 112
    %1277 = vset.pattern.permute.xlu0 %v1276
    %1278 = vperm.xlu0 %1277, %v1189
    %v1279 = vpop.permute.xlu0 %1278
    %v1280 = vlaneseq
    %v1281 = vshrl.u32 %v1280, 7
    %v1282 = vadd.s32 %v1281, 120
    %1283 = vset.pattern.permute.xlu0 %v1282
    %1284 = vperm.xlu0 %1283, %v1189
    %v1285 = vpop.permute.xlu0 %1284
    %v1286 = vperm.slane %v1174, 1
    %v1287 = vlaneseq
    %v1288 = vshrl.u32 %v1287, 7
    %1290 = vset.pattern.permute.xlu0 %v1288
    %1291 = vperm.xlu0 %1290, %v1286
    %v1292 = vpop.permute.xlu0 %1291
    %v1293 = vlaneseq
    %v1294 = vshrl.u32 %v1293, 7
    %v1295 = vadd.s32 %v1294, 8
    %1296 = vset.pattern.permute.xlu0 %v1295
    %1297 = vperm.xlu0 %1296, %v1286
    %v1298 = vpop.permute.xlu0 %1297
    %v1299 = vlaneseq
    %v1300 = vshrl.u32 %v1299, 7
    %v1301 = vadd.s32 %v1300, 16
    %1302 = vset.pattern.permute.xlu0 %v1301
    %1303 = vperm.xlu0 %1302, %v1286
    %v1304 = vpop.permute.xlu0 %1303
    %v1305 = vlaneseq
    %v1306 = vshrl.u32 %v1305, 7
    %v1307 = vadd.s32 %v1306, 24
    %1308 = vset.pattern.permute.xlu0 %v1307
    %1309 = vperm.xlu0 %1308, %v1286
    %v1310 = vpop.permute.xlu0 %1309
    %v1311 = vlaneseq
    %v1312 = vshrl.u32 %v1311, 7
    %v1313 = vadd.s32 %v1312, 32
    %1314 = vset.pattern.permute.xlu0 %v1313
    %1315 = vperm.xlu0 %1314, %v1286
    %v1316 = vpop.permute.xlu0 %1315
    %v1317 = vlaneseq
    %v1318 = vshrl.u32 %v1317, 7
    %v1319 = vadd.s32 %v1318, 40
    %1320 = vset.pattern.permute.xlu0 %v1319
    %1321 = vperm.xlu0 %1320, %v1286
    %v1322 = vpop.permute.xlu0 %1321
    %v1323 = vlaneseq
    %v1324 = vshrl.u32 %v1323, 7
    %v1325 = vadd.s32 %v1324, 48
    %1326 = vset.pattern.permute.xlu0 %v1325
    %1327 = vperm.xlu0 %1326, %v1286
    %v1328 = vpop.permute.xlu0 %1327
    %v1329 = vlaneseq
    %v1330 = vshrl.u32 %v1329, 7
    %v1331 = vadd.s32 %v1330, 56
    %1332 = vset.pattern.permute.xlu0 %v1331
    %1333 = vperm.xlu0 %1332, %v1286
    %v1334 = vpop.permute.xlu0 %1333
    %v1335 = vlaneseq
    %v1336 = vshrl.u32 %v1335, 7
    %v1337 = vadd.s32 %v1336, 64
    %1338 = vset.pattern.permute.xlu0 %v1337
    %1339 = vperm.xlu0 %1338, %v1286
    %v1340 = vpop.permute.xlu0 %1339
    %v1341 = vlaneseq
    %v1342 = vshrl.u32 %v1341, 7
    %v1343 = vadd.s32 %v1342, 72
    %1344 = vset.pattern.permute.xlu0 %v1343
    %1345 = vperm.xlu0 %1344, %v1286
    %v1346 = vpop.permute.xlu0 %1345
    %v1347 = vlaneseq
    %v1348 = vshrl.u32 %v1347, 7
    %v1349 = vadd.s32 %v1348, 80
    %1350 = vset.pattern.permute.xlu0 %v1349
    %1351 = vperm.xlu0 %1350, %v1286
    %v1352 = vpop.permute.xlu0 %1351
    %v1353 = vlaneseq
    %v1354 = vshrl.u32 %v1353, 7
    %v1355 = vadd.s32 %v1354, 88
    %1356 = vset.pattern.permute.xlu0 %v1355
    %1357 = vperm.xlu0 %1356, %v1286
    %v1358 = vpop.permute.xlu0 %1357
    %v1359 = vlaneseq
    %v1360 = vshrl.u32 %v1359, 7
    %v1361 = vadd.s32 %v1360, 96
    %1362 = vset.pattern.permute.xlu0 %v1361
    %1363 = vperm.xlu0 %1362, %v1286
    %v1364 = vpop.permute.xlu0 %1363
    %v1365 = vlaneseq
    %v1366 = vshrl.u32 %v1365, 7
    %v1367 = vadd.s32 %v1366, 104
    %1368 = vset.pattern.permute.xlu0 %v1367
    %1369 = vperm.xlu0 %1368, %v1286
    %v1370 = vpop.permute.xlu0 %1369
    %v1371 = vlaneseq
    %v1372 = vshrl.u32 %v1371, 7
    %v1373 = vadd.s32 %v1372, 112
    %1374 = vset.pattern.permute.xlu0 %v1373
    %1375 = vperm.xlu0 %1374, %v1286
    %v1376 = vpop.permute.xlu0 %1375
    %v1377 = vlaneseq
    %v1378 = vshrl.u32 %v1377, 7
    %v1379 = vadd.s32 %v1378, 120
    %1380 = vset.pattern.permute.xlu0 %v1379
    %1381 = vperm.xlu0 %1380, %v1286
    %v1382 = vpop.permute.xlu0 %1381
    %v1383 = vperm.slane %v1174, 2
    %v1384 = vlaneseq
    %v1385 = vshrl.u32 %v1384, 7
    %1387 = vset.pattern.permute.xlu0 %v1385
    %1388 = vperm.xlu0 %1387, %v1383
    %v1389 = vpop.permute.xlu0 %1388
    %v1390 = vlaneseq
    %v1391 = vshrl.u32 %v1390, 7
    %v1392 = vadd.s32 %v1391, 8
    %1393 = vset.pattern.permute.xlu0 %v1392
    %1394 = vperm.xlu0 %1393, %v1383
    %v1395 = vpop.permute.xlu0 %1394
    %v1396 = vlaneseq
    %v1397 = vshrl.u32 %v1396, 7
    %v1398 = vadd.s32 %v1397, 16
    %1399 = vset.pattern.permute.xlu0 %v1398
    %1400 = vperm.xlu0 %1399, %v1383
    %v1401 = vpop.permute.xlu0 %1400
    %v1402 = vlaneseq
    %v1403 = vshrl.u32 %v1402, 7
    %v1404 = vadd.s32 %v1403, 24
    %1405 = vset.pattern.permute.xlu0 %v1404
    %1406 = vperm.xlu0 %1405, %v1383
    %v1407 = vpop.permute.xlu0 %1406
    %v1408 = vlaneseq
    %v1409 = vshrl.u32 %v1408, 7
    %v1410 = vadd.s32 %v1409, 32
    %1411 = vset.pattern.permute.xlu0 %v1410
    %1412 = vperm.xlu0 %1411, %v1383
    %v1413 = vpop.permute.xlu0 %1412
    %v1414 = vlaneseq
    %v1415 = vshrl.u32 %v1414, 7
    %v1416 = vadd.s32 %v1415, 40
    %1417 = vset.pattern.permute.xlu0 %v1416
    %1418 = vperm.xlu0 %1417, %v1383
    %v1419 = vpop.permute.xlu0 %1418
    %v1420 = vlaneseq
    %v1421 = vshrl.u32 %v1420, 7
    %v1422 = vadd.s32 %v1421, 48
    %1423 = vset.pattern.permute.xlu0 %v1422
    %1424 = vperm.xlu0 %1423, %v1383
    %v1425 = vpop.permute.xlu0 %1424
    %v1426 = vlaneseq
    %v1427 = vshrl.u32 %v1426, 7
    %v1428 = vadd.s32 %v1427, 56
    %1429 = vset.pattern.permute.xlu0 %v1428
    %1430 = vperm.xlu0 %1429, %v1383
    %v1431 = vpop.permute.xlu0 %1430
    %v1432 = vlaneseq
    %v1433 = vshrl.u32 %v1432, 7
    %v1434 = vadd.s32 %v1433, 64
    %1435 = vset.pattern.permute.xlu0 %v1434
    %1436 = vperm.xlu0 %1435, %v1383
    %v1437 = vpop.permute.xlu0 %1436
    %v1438 = vlaneseq
    %v1439 = vshrl.u32 %v1438, 7
    %v1440 = vadd.s32 %v1439, 72
    %1441 = vset.pattern.permute.xlu0 %v1440
    %1442 = vperm.xlu0 %1441, %v1383
    %v1443 = vpop.permute.xlu0 %1442
    %v1444 = vlaneseq
    %v1445 = vshrl.u32 %v1444, 7
    %v1446 = vadd.s32 %v1445, 80
    %1447 = vset.pattern.permute.xlu0 %v1446
    %1448 = vperm.xlu0 %1447, %v1383
    %v1449 = vpop.permute.xlu0 %1448
    %v1450 = vlaneseq
    %v1451 = vshrl.u32 %v1450, 7
    %v1452 = vadd.s32 %v1451, 88
    %1453 = vset.pattern.permute.xlu0 %v1452
    %1454 = vperm.xlu0 %1453, %v1383
    %v1455 = vpop.permute.xlu0 %1454
    %v1456 = vlaneseq
    %v1457 = vshrl.u32 %v1456, 7
    %v1458 = vadd.s32 %v1457, 96
    %1459 = vset.pattern.permute.xlu0 %v1458
    %1460 = vperm.xlu0 %1459, %v1383
    %v1461 = vpop.permute.xlu0 %1460
    %v1462 = vlaneseq
    %v1463 = vshrl.u32 %v1462, 7
    %v1464 = vadd.s32 %v1463, 104
    %1465 = vset.pattern.permute.xlu0 %v1464
    %1466 = vperm.xlu0 %1465, %v1383
    %v1467 = vpop.permute.xlu0 %1466
    %v1468 = vlaneseq
    %v1469 = vshrl.u32 %v1468, 7
    %v1470 = vadd.s32 %v1469, 112
    %1471 = vset.pattern.permute.xlu0 %v1470
    %1472 = vperm.xlu0 %1471, %v1383
    %v1473 = vpop.permute.xlu0 %1472
    %v1474 = vlaneseq
    %v1475 = vshrl.u32 %v1474, 7
    %v1476 = vadd.s32 %v1475, 120
    %1477 = vset.pattern.permute.xlu0 %v1476
    %1478 = vperm.xlu0 %1477, %v1383
    %v1479 = vpop.permute.xlu0 %1478
    %v1480 = vperm.slane %v1174, 3
    %v1481 = vlaneseq
    %v1482 = vshrl.u32 %v1481, 7
    %1484 = vset.pattern.permute.xlu0 %v1482
    %1485 = vperm.xlu0 %1484, %v1480
    %v1486 = vpop.permute.xlu0 %1485
    %v1487 = vlaneseq
    %v1488 = vshrl.u32 %v1487, 7
    %v1489 = vadd.s32 %v1488, 8
    %1490 = vset.pattern.permute.xlu0 %v1489
    %1491 = vperm.xlu0 %1490, %v1480
    %v1492 = vpop.permute.xlu0 %1491
    %v1493 = vlaneseq
    %v1494 = vshrl.u32 %v1493, 7
    %v1495 = vadd.s32 %v1494, 16
    %1496 = vset.pattern.permute.xlu0 %v1495
    %1497 = vperm.xlu0 %1496, %v1480
    %v1498 = vpop.permute.xlu0 %1497
    %v1499 = vlaneseq
    %v1500 = vshrl.u32 %v1499, 7
    %v1501 = vadd.s32 %v1500, 24
    %1502 = vset.pattern.permute.xlu0 %v1501
    %1503 = vperm.xlu0 %1502, %v1480
    %v1504 = vpop.permute.xlu0 %1503
    %v1505 = vlaneseq
    %v1506 = vshrl.u32 %v1505, 7
    %v1507 = vadd.s32 %v1506, 32
    %1508 = vset.pattern.permute.xlu0 %v1507
    %1509 = vperm.xlu0 %1508, %v1480
    %v1510 = vpop.permute.xlu0 %1509
    %v1511 = vlaneseq
    %v1512 = vshrl.u32 %v1511, 7
    %v1513 = vadd.s32 %v1512, 40
    %1514 = vset.pattern.permute.xlu0 %v1513
    %1515 = vperm.xlu0 %1514, %v1480
    %v1516 = vpop.permute.xlu0 %1515
    %v1517 = vlaneseq
    %v1518 = vshrl.u32 %v1517, 7
    %v1519 = vadd.s32 %v1518, 48
    %1520 = vset.pattern.permute.xlu0 %v1519
    %1521 = vperm.xlu0 %1520, %v1480
    %v1522 = vpop.permute.xlu0 %1521
    %v1523 = vlaneseq
    %v1524 = vshrl.u32 %v1523, 7
    %v1525 = vadd.s32 %v1524, 56
    %1526 = vset.pattern.permute.xlu0 %v1525
    %1527 = vperm.xlu0 %1526, %v1480
    %v1528 = vpop.permute.xlu0 %1527
    %v1529 = vlaneseq
    %v1530 = vshrl.u32 %v1529, 7
    %v1531 = vadd.s32 %v1530, 64
    %1532 = vset.pattern.permute.xlu0 %v1531
    %1533 = vperm.xlu0 %1532, %v1480
    %v1534 = vpop.permute.xlu0 %1533
    %v1535 = vlaneseq
    %v1536 = vshrl.u32 %v1535, 7
    %v1537 = vadd.s32 %v1536, 72
    %1538 = vset.pattern.permute.xlu0 %v1537
    %1539 = vperm.xlu0 %1538, %v1480
    %v1540 = vpop.permute.xlu0 %1539
    %v1541 = vlaneseq
    %v1542 = vshrl.u32 %v1541, 7
    %v1543 = vadd.s32 %v1542, 80
    %1544 = vset.pattern.permute.xlu0 %v1543
    %1545 = vperm.xlu0 %1544, %v1480
    %v1546 = vpop.permute.xlu0 %1545
    %v1547 = vlaneseq
    %v1548 = vshrl.u32 %v1547, 7
    %v1549 = vadd.s32 %v1548, 88
    %1550 = vset.pattern.permute.xlu0 %v1549
    %1551 = vperm.xlu0 %1550, %v1480
    %v1552 = vpop.permute.xlu0 %1551
    %v1553 = vlaneseq
    %v1554 = vshrl.u32 %v1553, 7
    %v1555 = vadd.s32 %v1554, 96
    %1556 = vset.pattern.permute.xlu0 %v1555
    %1557 = vperm.xlu0 %1556, %v1480
    %v1558 = vpop.permute.xlu0 %1557
    %v1559 = vlaneseq
    %v1560 = vshrl.u32 %v1559, 7
    %v1561 = vadd.s32 %v1560, 104
    %1562 = vset.pattern.permute.xlu0 %v1561
    %1563 = vperm.xlu0 %1562, %v1480
    %v1564 = vpop.permute.xlu0 %1563
    %v1565 = vlaneseq
    %v1566 = vshrl.u32 %v1565, 7
    %v1567 = vadd.s32 %v1566, 112
    %1568 = vset.pattern.permute.xlu0 %v1567
    %1569 = vperm.xlu0 %1568, %v1480
    %v1570 = vpop.permute.xlu0 %1569
    %v1571 = vlaneseq
    %v1572 = vshrl.u32 %v1571, 7
    %v1573 = vadd.s32 %v1572, 120
    %1574 = vset.pattern.permute.xlu0 %v1573
    %1575 = vperm.xlu0 %1574, %v1480
    %v1576 = vpop.permute.xlu0 %1575
    %v1577 = vperm.slane %v1174, 4
    %v1578 = vlaneseq
    %v1579 = vshrl.u32 %v1578, 7
    %1581 = vset.pattern.permute.xlu0 %v1579
    %1582 = vperm.xlu0 %1581, %v1577
    %v1583 = vpop.permute.xlu0 %1582
    %v1584 = vlaneseq
    %v1585 = vshrl.u32 %v1584, 7
    %v1586 = vadd.s32 %v1585, 8
    %1587 = vset.pattern.permute.xlu0 %v1586
    %1588 = vperm.xlu0 %1587, %v1577
    %v1589 = vpop.permute.xlu0 %1588
    %v1590 = vlaneseq
    %v1591 = vshrl.u32 %v1590, 7
    %v1592 = vadd.s32 %v1591, 16
    %1593 = vset.pattern.permute.xlu0 %v1592
    %1594 = vperm.xlu0 %1593, %v1577
    %v1595 = vpop.permute.xlu0 %1594
    %v1596 = vlaneseq
    %v1597 = vshrl.u32 %v1596, 7
    %v1598 = vadd.s32 %v1597, 24
    %1599 = vset.pattern.permute.xlu0 %v1598
    %1600 = vperm.xlu0 %1599, %v1577
    %v1601 = vpop.permute.xlu0 %1600
    %v1602 = vlaneseq
    %v1603 = vshrl.u32 %v1602, 7
    %v1604 = vadd.s32 %v1603, 32
    %1605 = vset.pattern.permute.xlu0 %v1604
    %1606 = vperm.xlu0 %1605, %v1577
    %v1607 = vpop.permute.xlu0 %1606
    %v1608 = vlaneseq
    %v1609 = vshrl.u32 %v1608, 7
    %v1610 = vadd.s32 %v1609, 40
    %1611 = vset.pattern.permute.xlu0 %v1610
    %1612 = vperm.xlu0 %1611, %v1577
    %v1613 = vpop.permute.xlu0 %1612
    %v1614 = vlaneseq
    %v1615 = vshrl.u32 %v1614, 7
    %v1616 = vadd.s32 %v1615, 48
    %1617 = vset.pattern.permute.xlu0 %v1616
    %1618 = vperm.xlu0 %1617, %v1577
    %v1619 = vpop.permute.xlu0 %1618
    %v1620 = vlaneseq
    %v1621 = vshrl.u32 %v1620, 7
    %v1622 = vadd.s32 %v1621, 56
    %1623 = vset.pattern.permute.xlu0 %v1622
    %1624 = vperm.xlu0 %1623, %v1577
    %v1625 = vpop.permute.xlu0 %1624
    %v1626 = vlaneseq
    %v1627 = vshrl.u32 %v1626, 7
    %v1628 = vadd.s32 %v1627, 64
    %1629 = vset.pattern.permute.xlu0 %v1628
    %1630 = vperm.xlu0 %1629, %v1577
    %v1631 = vpop.permute.xlu0 %1630
    %v1632 = vlaneseq
    %v1633 = vshrl.u32 %v1632, 7
    %v1634 = vadd.s32 %v1633, 72
    %1635 = vset.pattern.permute.xlu0 %v1634
    %1636 = vperm.xlu0 %1635, %v1577
    %v1637 = vpop.permute.xlu0 %1636
    %v1638 = vlaneseq
    %v1639 = vshrl.u32 %v1638, 7
    %v1640 = vadd.s32 %v1639, 80
    %1641 = vset.pattern.permute.xlu0 %v1640
    %1642 = vperm.xlu0 %1641, %v1577
    %v1643 = vpop.permute.xlu0 %1642
    %v1644 = vlaneseq
    %v1645 = vshrl.u32 %v1644, 7
    %v1646 = vadd.s32 %v1645, 88
    %1647 = vset.pattern.permute.xlu0 %v1646
    %1648 = vperm.xlu0 %1647, %v1577
    %v1649 = vpop.permute.xlu0 %1648
    %v1650 = vlaneseq
    %v1651 = vshrl.u32 %v1650, 7
    %v1652 = vadd.s32 %v1651, 96
    %1653 = vset.pattern.permute.xlu0 %v1652
    %1654 = vperm.xlu0 %1653, %v1577
    %v1655 = vpop.permute.xlu0 %1654
    %v1656 = vlaneseq
    %v1657 = vshrl.u32 %v1656, 7
    %v1658 = vadd.s32 %v1657, 104
    %1659 = vset.pattern.permute.xlu0 %v1658
    %1660 = vperm.xlu0 %1659, %v1577
    %v1661 = vpop.permute.xlu0 %1660
    %v1662 = vlaneseq
    %v1663 = vshrl.u32 %v1662, 7
    %v1664 = vadd.s32 %v1663, 112
    %1665 = vset.pattern.permute.xlu0 %v1664
    %1666 = vperm.xlu0 %1665, %v1577
    %v1667 = vpop.permute.xlu0 %1666
    %v1668 = vlaneseq
    %v1669 = vshrl.u32 %v1668, 7
    %v1670 = vadd.s32 %v1669, 120
    %1671 = vset.pattern.permute.xlu0 %v1670
    %1672 = vperm.xlu0 %1671, %v1577
    %v1673 = vpop.permute.xlu0 %1672
    %v1674 = vperm.slane %v1174, 5
    %v1675 = vlaneseq
    %v1676 = vshrl.u32 %v1675, 7
    %1678 = vset.pattern.permute.xlu0 %v1676
    %1679 = vperm.xlu0 %1678, %v1674
    %v1680 = vpop.permute.xlu0 %1679
    %v1681 = vlaneseq
    %v1682 = vshrl.u32 %v1681, 7
    %v1683 = vadd.s32 %v1682, 8
    %1684 = vset.pattern.permute.xlu0 %v1683
    %1685 = vperm.xlu0 %1684, %v1674
    %v1686 = vpop.permute.xlu0 %1685
    %v1687 = vlaneseq
    %v1688 = vshrl.u32 %v1687, 7
    %v1689 = vadd.s32 %v1688, 16
    %1690 = vset.pattern.permute.xlu0 %v1689
    %1691 = vperm.xlu0 %1690, %v1674
    %v1692 = vpop.permute.xlu0 %1691
    %v1693 = vlaneseq
    %v1694 = vshrl.u32 %v1693, 7
    %v1695 = vadd.s32 %v1694, 24
    %1696 = vset.pattern.permute.xlu0 %v1695
    %1697 = vperm.xlu0 %1696, %v1674
    %v1698 = vpop.permute.xlu0 %1697
    %v1699 = vlaneseq
    %v1700 = vshrl.u32 %v1699, 7
    %v1701 = vadd.s32 %v1700, 32
    %1702 = vset.pattern.permute.xlu0 %v1701
    %1703 = vperm.xlu0 %1702, %v1674
    %v1704 = vpop.permute.xlu0 %1703
    %v1705 = vlaneseq
    %v1706 = vshrl.u32 %v1705, 7
    %v1707 = vadd.s32 %v1706, 40
    %1708 = vset.pattern.permute.xlu0 %v1707
    %1709 = vperm.xlu0 %1708, %v1674
    %v1710 = vpop.permute.xlu0 %1709
    %v1711 = vlaneseq
    %v1712 = vshrl.u32 %v1711, 7
    %v1713 = vadd.s32 %v1712, 48
    %1714 = vset.pattern.permute.xlu0 %v1713
    %1715 = vperm.xlu0 %1714, %v1674
    %v1716 = vpop.permute.xlu0 %1715
    %v1717 = vlaneseq
    %v1718 = vshrl.u32 %v1717, 7
    %v1719 = vadd.s32 %v1718, 56
    %1720 = vset.pattern.permute.xlu0 %v1719
    %1721 = vperm.xlu0 %1720, %v1674
    %v1722 = vpop.permute.xlu0 %1721
    %v1723 = vlaneseq
    %v1724 = vshrl.u32 %v1723, 7
    %v1725 = vadd.s32 %v1724, 64
    %1726 = vset.pattern.permute.xlu0 %v1725
    %1727 = vperm.xlu0 %1726, %v1674
    %v1728 = vpop.permute.xlu0 %1727
    %v1729 = vlaneseq
    %v1730 = vshrl.u32 %v1729, 7
    %v1731 = vadd.s32 %v1730, 72
    %1732 = vset.pattern.permute.xlu0 %v1731
    %1733 = vperm.xlu0 %1732, %v1674
    %v1734 = vpop.permute.xlu0 %1733
    %v1735 = vlaneseq
    %v1736 = vshrl.u32 %v1735, 7
    %v1737 = vadd.s32 %v1736, 80
    %1738 = vset.pattern.permute.xlu0 %v1737
    %1739 = vperm.xlu0 %1738, %v1674
    %v1740 = vpop.permute.xlu0 %1739
    %v1741 = vlaneseq
    %v1742 = vshrl.u32 %v1741, 7
    %v1743 = vadd.s32 %v1742, 88
    %1744 = vset.pattern.permute.xlu0 %v1743
    %1745 = vperm.xlu0 %1744, %v1674
    %v1746 = vpop.permute.xlu0 %1745
    %v1747 = vlaneseq
    %v1748 = vshrl.u32 %v1747, 7
    %v1749 = vadd.s32 %v1748, 96
    %1750 = vset.pattern.permute.xlu0 %v1749
    %1751 = vperm.xlu0 %1750, %v1674
    %v1752 = vpop.permute.xlu0 %1751
    %v1753 = vlaneseq
    %v1754 = vshrl.u32 %v1753, 7
    %v1755 = vadd.s32 %v1754, 104
    %1756 = vset.pattern.permute.xlu0 %v1755
    %1757 = vperm.xlu0 %1756, %v1674
    %v1758 = vpop.permute.xlu0 %1757
    %v1759 = vlaneseq
    %v1760 = vshrl.u32 %v1759, 7
    %v1761 = vadd.s32 %v1760, 112
    %1762 = vset.pattern.permute.xlu0 %v1761
    %1763 = vperm.xlu0 %1762, %v1674
    %v1764 = vpop.permute.xlu0 %1763
    %v1765 = vlaneseq
    %v1766 = vshrl.u32 %v1765, 7
    %v1767 = vadd.s32 %v1766, 120
    %1768 = vset.pattern.permute.xlu0 %v1767
    %1769 = vperm.xlu0 %1768, %v1674
    %v1770 = vpop.permute.xlu0 %1769
    %v1771 = vperm.slane %v1174, 6
    %v1772 = vlaneseq
    %v1773 = vshrl.u32 %v1772, 7
    %1775 = vset.pattern.permute.xlu0 %v1773
    %1776 = vperm.xlu0 %1775, %v1771
    %v1777 = vpop.permute.xlu0 %1776
    %v1778 = vlaneseq
    %v1779 = vshrl.u32 %v1778, 7
    %v1780 = vadd.s32 %v1779, 8
    %1781 = vset.pattern.permute.xlu0 %v1780
    %1782 = vperm.xlu0 %1781, %v1771
    %v1783 = vpop.permute.xlu0 %1782
    %v1784 = vlaneseq
    %v1785 = vshrl.u32 %v1784, 7
    %v1786 = vadd.s32 %v1785, 16
    %1787 = vset.pattern.permute.xlu0 %v1786
    %1788 = vperm.xlu0 %1787, %v1771
    %v1789 = vpop.permute.xlu0 %1788
    %v1790 = vlaneseq
    %v1791 = vshrl.u32 %v1790, 7
    %v1792 = vadd.s32 %v1791, 24
    %1793 = vset.pattern.permute.xlu0 %v1792
    %1794 = vperm.xlu0 %1793, %v1771
    %v1795 = vpop.permute.xlu0 %1794
    %v1796 = vlaneseq
    %v1797 = vshrl.u32 %v1796, 7
    %v1798 = vadd.s32 %v1797, 32
    %1799 = vset.pattern.permute.xlu0 %v1798
    %1800 = vperm.xlu0 %1799, %v1771
    %v1801 = vpop.permute.xlu0 %1800
    %v1802 = vlaneseq
    %v1803 = vshrl.u32 %v1802, 7
    %v1804 = vadd.s32 %v1803, 40
    %1805 = vset.pattern.permute.xlu0 %v1804
    %1806 = vperm.xlu0 %1805, %v1771
    %v1807 = vpop.permute.xlu0 %1806
    %v1808 = vlaneseq
    %v1809 = vshrl.u32 %v1808, 7
    %v1810 = vadd.s32 %v1809, 48
    %1811 = vset.pattern.permute.xlu0 %v1810
    %1812 = vperm.xlu0 %1811, %v1771
    %v1813 = vpop.permute.xlu0 %1812
    %v1814 = vlaneseq
    %v1815 = vshrl.u32 %v1814, 7
    %v1816 = vadd.s32 %v1815, 56
    %1817 = vset.pattern.permute.xlu0 %v1816
    %1818 = vperm.xlu0 %1817, %v1771
    %v1819 = vpop.permute.xlu0 %1818
    %v1820 = vlaneseq
    %v1821 = vshrl.u32 %v1820, 7
    %v1822 = vadd.s32 %v1821, 64
    %1823 = vset.pattern.permute.xlu0 %v1822
    %1824 = vperm.xlu0 %1823, %v1771
    %v1825 = vpop.permute.xlu0 %1824
    %v1826 = vlaneseq
    %v1827 = vshrl.u32 %v1826, 7
    %v1828 = vadd.s32 %v1827, 72
    %1829 = vset.pattern.permute.xlu0 %v1828
    %1830 = vperm.xlu0 %1829, %v1771
    %v1831 = vpop.permute.xlu0 %1830
    %v1832 = vlaneseq
    %v1833 = vshrl.u32 %v1832, 7
    %v1834 = vadd.s32 %v1833, 80
    %1835 = vset.pattern.permute.xlu0 %v1834
    %1836 = vperm.xlu0 %1835, %v1771
    %v1837 = vpop.permute.xlu0 %1836
    %v1838 = vlaneseq
    %v1839 = vshrl.u32 %v1838, 7
    %v1840 = vadd.s32 %v1839, 88
    %1841 = vset.pattern.permute.xlu0 %v1840
    %1842 = vperm.xlu0 %1841, %v1771
    %v1843 = vpop.permute.xlu0 %1842
    %v1844 = vlaneseq
    %v1845 = vshrl.u32 %v1844, 7
    %v1846 = vadd.s32 %v1845, 96
    %1847 = vset.pattern.permute.xlu0 %v1846
    %1848 = vperm.xlu0 %1847, %v1771
    %v1849 = vpop.permute.xlu0 %1848
    %v1850 = vlaneseq
    %v1851 = vshrl.u32 %v1850, 7
    %v1852 = vadd.s32 %v1851, 104
    %1853 = vset.pattern.permute.xlu0 %v1852
    %1854 = vperm.xlu0 %1853, %v1771
    %v1855 = vpop.permute.xlu0 %1854
    %v1856 = vlaneseq
    %v1857 = vshrl.u32 %v1856, 7
    %v1858 = vadd.s32 %v1857, 112
    %1859 = vset.pattern.permute.xlu0 %v1858
    %1860 = vperm.xlu0 %1859, %v1771
    %v1861 = vpop.permute.xlu0 %1860
    %v1862 = vlaneseq
    %v1863 = vshrl.u32 %v1862, 7
    %v1864 = vadd.s32 %v1863, 120
    %1865 = vset.pattern.permute.xlu0 %v1864
    %1866 = vperm.xlu0 %1865, %v1771
    %v1867 = vpop.permute.xlu0 %1866
    %v1868 = vperm.slane %v1174, 7
    %v1869 = vlaneseq
    %v1870 = vshrl.u32 %v1869, 7
    %1872 = vset.pattern.permute.xlu0 %v1870
    %1873 = vperm.xlu0 %1872, %v1868
    %v1874 = vpop.permute.xlu0 %1873
    %v1875 = vlaneseq
    %v1876 = vshrl.u32 %v1875, 7
    %v1877 = vadd.s32 %v1876, 8
    %1878 = vset.pattern.permute.xlu0 %v1877
    %1879 = vperm.xlu0 %1878, %v1868
    %v1880 = vpop.permute.xlu0 %1879
    %v1881 = vlaneseq
    %v1882 = vshrl.u32 %v1881, 7
    %v1883 = vadd.s32 %v1882, 16
    %1884 = vset.pattern.permute.xlu0 %v1883
    %1885 = vperm.xlu0 %1884, %v1868
    %v1886 = vpop.permute.xlu0 %1885
    %v1887 = vlaneseq
    %v1888 = vshrl.u32 %v1887, 7
    %v1889 = vadd.s32 %v1888, 24
    %1890 = vset.pattern.permute.xlu0 %v1889
    %1891 = vperm.xlu0 %1890, %v1868
    %v1892 = vpop.permute.xlu0 %1891
    %v1893 = vlaneseq
    %v1894 = vshrl.u32 %v1893, 7
    %v1895 = vadd.s32 %v1894, 32
    %1896 = vset.pattern.permute.xlu0 %v1895
    %1897 = vperm.xlu0 %1896, %v1868
    %v1898 = vpop.permute.xlu0 %1897
    %v1899 = vlaneseq
    %v1900 = vshrl.u32 %v1899, 7
    %v1901 = vadd.s32 %v1900, 40
    %1902 = vset.pattern.permute.xlu0 %v1901
    %1903 = vperm.xlu0 %1902, %v1868
    %v1904 = vpop.permute.xlu0 %1903
    %v1905 = vlaneseq
    %v1906 = vshrl.u32 %v1905, 7
    %v1907 = vadd.s32 %v1906, 48
    %1908 = vset.pattern.permute.xlu0 %v1907
    %1909 = vperm.xlu0 %1908, %v1868
    %v1910 = vpop.permute.xlu0 %1909
    %v1911 = vlaneseq
    %v1912 = vshrl.u32 %v1911, 7
    %v1913 = vadd.s32 %v1912, 56
    %1914 = vset.pattern.permute.xlu0 %v1913
    %1915 = vperm.xlu0 %1914, %v1868
    %v1916 = vpop.permute.xlu0 %1915
    %v1917 = vlaneseq
    %v1918 = vshrl.u32 %v1917, 7
    %v1919 = vadd.s32 %v1918, 64
    %1920 = vset.pattern.permute.xlu0 %v1919
    %1921 = vperm.xlu0 %1920, %v1868
    %v1922 = vpop.permute.xlu0 %1921
    %v1923 = vlaneseq
    %v1924 = vshrl.u32 %v1923, 7
    %v1925 = vadd.s32 %v1924, 72
    %1926 = vset.pattern.permute.xlu0 %v1925
    %1927 = vperm.xlu0 %1926, %v1868
    %v1928 = vpop.permute.xlu0 %1927
    %v1929 = vlaneseq
    %v1930 = vshrl.u32 %v1929, 7
    %v1931 = vadd.s32 %v1930, 80
    %1932 = vset.pattern.permute.xlu0 %v1931
    %1933 = vperm.xlu0 %1932, %v1868
    %v1934 = vpop.permute.xlu0 %1933
    %v1935 = vlaneseq
    %v1936 = vshrl.u32 %v1935, 7
    %v1937 = vadd.s32 %v1936, 88
    %1938 = vset.pattern.permute.xlu0 %v1937
    %1939 = vperm.xlu0 %1938, %v1868
    %v1940 = vpop.permute.xlu0 %1939
    %v1941 = vlaneseq
    %v1942 = vshrl.u32 %v1941, 7
    %v1943 = vadd.s32 %v1942, 96
    %1944 = vset.pattern.permute.xlu0 %v1943
    %1945 = vperm.xlu0 %1944, %v1868
    %v1946 = vpop.permute.xlu0 %1945
    %v1947 = vlaneseq
    %v1948 = vshrl.u32 %v1947, 7
    %v1949 = vadd.s32 %v1948, 104
    %1950 = vset.pattern.permute.xlu0 %v1949
    %1951 = vperm.xlu0 %1950, %v1868
    %v1952 = vpop.permute.xlu0 %1951
    %v1953 = vlaneseq
    %v1954 = vshrl.u32 %v1953, 7
    %v1955 = vadd.s32 %v1954, 112
    %1956 = vset.pattern.permute.xlu0 %v1955
    %1957 = vperm.xlu0 %1956, %v1868
    %v1958 = vpop.permute.xlu0 %1957
    %v1959 = vlaneseq
    %v1960 = vshrl.u32 %v1959, 7
    %v1961 = vadd.s32 %v1960, 120
    %1962 = vset.pattern.permute.xlu0 %v1961
    %1963 = vperm.xlu0 %1962, %v1868
    %v1964 = vpop.permute.xlu0 %1963
    %v1965 = vmul.f32 %v1195, %v191
    %v1966 = vmul.f32 %v1201, %v192
    %v1967 = vmul.f32 %v1207, %v193
    %v1968 = vmul.f32 %v1213, %v194
    %v1969 = vmul.f32 %v1219, %v195
    %v1970 = vmul.f32 %v1225, %v196
    %v1971 = vmul.f32 %v1231, %v197
    %v1972 = vmul.f32 %v1237, %v198
    %v1973 = vmul.f32 %v1243, %v199
    %v1974 = vmul.f32 %v1249, %v200
    %v1975 = vmul.f32 %v1255, %v201
    %v1976 = vmul.f32 %v1261, %v202
    %v1977 = vmul.f32 %v1267, %v203
    %v1978 = vmul.f32 %v1273, %v204
    %v1979 = vmul.f32 %v1279, %v205
    %v1980 = vmul.f32 %v1285, %v206
    %v1981 = vmul.f32 %v1292, %v207
    %v1982 = vmul.f32 %v1298, %v208
    %v1983 = vmul.f32 %v1304, %v209
    %v1984 = vmul.f32 %v1310, %v210
    %v1985 = vmul.f32 %v1316, %v211
    %v1986 = vmul.f32 %v1322, %v212
    %v1987 = vmul.f32 %v1328, %v213
    %v1988 = vmul.f32 %v1334, %v214
    %v1989 = vmul.f32 %v1340, %v215
    %v1990 = vmul.f32 %v1346, %v216
    %v1991 = vmul.f32 %v1352, %v217
    %v1992 = vmul.f32 %v1358, %v218
    %v1993 = vmul.f32 %v1364, %v219
    %v1994 = vmul.f32 %v1370, %v220
    %v1995 = vmul.f32 %v1376, %v221
    %v1996 = vmul.f32 %v1382, %v222
    %v1997 = vmul.f32 %v1389, %v223
    %v1998 = vmul.f32 %v1395, %v224
    %v1999 = vmul.f32 %v1401, %v225
    %v2000 = vmul.f32 %v1407, %v226
    %v2001 = vmul.f32 %v1413, %v227
    %v2002 = vmul.f32 %v1419, %v228
    %v2003 = vmul.f32 %v1425, %v229
    %v2004 = vmul.f32 %v1431, %v230
    %v2005 = vmul.f32 %v1437, %v231
    %v2006 = vmul.f32 %v1443, %v232
    %v2007 = vmul.f32 %v1449, %v233
    %v2008 = vmul.f32 %v1455, %v234
    %v2009 = vmul.f32 %v1461, %v235
    %v2010 = vmul.f32 %v1467, %v236
    %v2011 = vmul.f32 %v1473, %v237
    %v2012 = vmul.f32 %v1479, %v238
    %v2013 = vmul.f32 %v1486, %v239
    %v2014 = vmul.f32 %v1492, %v240
    %v2015 = vmul.f32 %v1498, %v241
    %v2016 = vmul.f32 %v1504, %v242
    %v2017 = vmul.f32 %v1510, %v243
    %v2018 = vmul.f32 %v1516, %v244
    %v2019 = vmul.f32 %v1522, %v245
    %v2020 = vmul.f32 %v1528, %v246
    %v2021 = vmul.f32 %v1534, %v247
    %v2022 = vmul.f32 %v1540, %v248
    %v2023 = vmul.f32 %v1546, %v249
    %v2024 = vmul.f32 %v1552, %v250
    %v2025 = vmul.f32 %v1558, %v251
    %v2026 = vmul.f32 %v1564, %v252
    %v2027 = vmul.f32 %v1570, %v253
    %v2028 = vmul.f32 %v1576, %v254
    %v2029 = vmul.f32 %v1583, %v255
    %v2030 = vmul.f32 %v1589, %v256
    %v2031 = vmul.f32 %v1595, %v257
    %v2032 = vmul.f32 %v1601, %v258
    %v2033 = vmul.f32 %v1607, %v259
    %v2034 = vmul.f32 %v1613, %v260
    %v2035 = vmul.f32 %v1619, %v261
    %v2036 = vmul.f32 %v1625, %v262
    %v2037 = vmul.f32 %v1631, %v263
    %v2038 = vmul.f32 %v1637, %v264
    %v2039 = vmul.f32 %v1643, %v265
    %v2040 = vmul.f32 %v1649, %v266
    %v2041 = vmul.f32 %v1655, %v267
    %v2042 = vmul.f32 %v1661, %v268
    %v2043 = vmul.f32 %v1667, %v269
    %v2044 = vmul.f32 %v1673, %v270
    %v2045 = vmul.f32 %v1680, %v271
    %v2046 = vmul.f32 %v1686, %v272
    %v2047 = vmul.f32 %v1692, %v273
    %v2048 = vmul.f32 %v1698, %v274
    %v2049 = vmul.f32 %v1704, %v275
    %v2050 = vmul.f32 %v1710, %v276
    %v2051 = vmul.f32 %v1716, %v277
    %v2052 = vmul.f32 %v1722, %v278
    %v2053 = vmul.f32 %v1728, %v279
    %v2054 = vmul.f32 %v1734, %v280
    %v2055 = vmul.f32 %v1740, %v281
    %v2056 = vmul.f32 %v1746, %v282
    %v2057 = vmul.f32 %v1752, %v283
    %v2058 = vmul.f32 %v1758, %v284
    %v2059 = vmul.f32 %v1764, %v285
    %v2060 = vmul.f32 %v1770, %v286
    %v2061 = vmul.f32 %v1777, %v287
    %v2062 = vmul.f32 %v1783, %v288
    %v2063 = vmul.f32 %v1789, %v289
    %v2064 = vmul.f32 %v1795, %v290
    %v2065 = vmul.f32 %v1801, %v291
    %v2066 = vmul.f32 %v1807, %v292
    %v2067 = vmul.f32 %v1813, %v293
    %v2068 = vmul.f32 %v1819, %v294
    %v2069 = vmul.f32 %v1825, %v295
    %v2070 = vmul.f32 %v1831, %v296
    %v2071 = vmul.f32 %v1837, %v297
    %v2072 = vmul.f32 %v1843, %v298
    %v2073 = vmul.f32 %v1849, %v299
    %v2074 = vmul.f32 %v1855, %v300
    %v2075 = vmul.f32 %v1861, %v301
    %v2076 = vmul.f32 %v1867, %v302
    %v2077 = vmul.f32 %v1874, %v303
    %v2078 = vmul.f32 %v1880, %v304
    %v2079 = vmul.f32 %v1886, %v305
    %v2080 = vmul.f32 %v1892, %v306
    %v2081 = vmul.f32 %v1898, %v307
    %v2082 = vmul.f32 %v1904, %v308
    %v2083 = vmul.f32 %v1910, %v309
    %v2084 = vmul.f32 %v1916, %v310
    %v2085 = vmul.f32 %v1922, %v311
    %v2086 = vmul.f32 %v1928, %v312
    %v2087 = vmul.f32 %v1934, %v313
    %v2088 = vmul.f32 %v1940, %v314
    %v2089 = vmul.f32 %v1946, %v315
    %v2090 = vmul.f32 %v1952, %v316
    %v2091 = vmul.f32 %v1958, %v317
    %v2092 = vmul.f32 %v1964, %v318
    %v2093 = vadd.f32 %v1965, %v1966
    %v2094 = vadd.f32 %v2093, %v1967
    %v2095 = vadd.f32 %v2094, %v1968
    %v2096 = vadd.f32 %v2095, %v1969
    %v2097 = vadd.f32 %v2096, %v1970
    %v2098 = vadd.f32 %v2097, %v1971
    %v2099 = vadd.f32 %v2098, %v1972
    %v2100 = vadd.f32 %v2099, %v1973
    %v2101 = vadd.f32 %v2100, %v1974
    %v2102 = vadd.f32 %v2101, %v1975
    %v2103 = vadd.f32 %v2102, %v1976
    %v2104 = vadd.f32 %v2103, %v1977
    %v2105 = vadd.f32 %v2104, %v1978
    %v2106 = vadd.f32 %v2105, %v1979
    %v2107 = vadd.f32 %v2106, %v1980
    %v2108 = vrot.slane %v2107, 4
    %v2109 = vadd.f32 %v2107, %v2108
    %v2110 = vrot.slane %v2109, 2
    %v2111 = vadd.f32 %v2109, %v2110
    %v2112 = vrot.slane %v2111, 1
    %v2113 = vadd.f32 %v2111, %v2112
    %v2114 = vadd.f32 %v1981, %v1982
    %v2115 = vadd.f32 %v2114, %v1983
    %v2116 = vadd.f32 %v2115, %v1984
    %v2117 = vadd.f32 %v2116, %v1985
    %v2118 = vadd.f32 %v2117, %v1986
    %v2119 = vadd.f32 %v2118, %v1987
    %v2120 = vadd.f32 %v2119, %v1988
    %v2121 = vadd.f32 %v2120, %v1989
    %v2122 = vadd.f32 %v2121, %v1990
    %v2123 = vadd.f32 %v2122, %v1991
    %v2124 = vadd.f32 %v2123, %v1992
    %v2125 = vadd.f32 %v2124, %v1993
    %v2126 = vadd.f32 %v2125, %v1994
    %v2127 = vadd.f32 %v2126, %v1995
    %v2128 = vadd.f32 %v2127, %v1996
    %v2129 = vrot.slane %v2128, 4
    %v2130 = vadd.f32 %v2128, %v2129
    %v2131 = vrot.slane %v2130, 2
    %v2132 = vadd.f32 %v2130, %v2131
    %v2133 = vrot.slane %v2132, 1
    %v2134 = vadd.f32 %v2132, %v2133
    %v2135 = vadd.f32 %v1997, %v1998
    %v2136 = vadd.f32 %v2135, %v1999
    %v2137 = vadd.f32 %v2136, %v2000
    %v2138 = vadd.f32 %v2137, %v2001
    %v2139 = vadd.f32 %v2138, %v2002
    %v2140 = vadd.f32 %v2139, %v2003
    %v2141 = vadd.f32 %v2140, %v2004
    %v2142 = vadd.f32 %v2141, %v2005
    %v2143 = vadd.f32 %v2142, %v2006
    %v2144 = vadd.f32 %v2143, %v2007
    %v2145 = vadd.f32 %v2144, %v2008
    %v2146 = vadd.f32 %v2145, %v2009
    %v2147 = vadd.f32 %v2146, %v2010
    %v2148 = vadd.f32 %v2147, %v2011
    %v2149 = vadd.f32 %v2148, %v2012
    %v2150 = vrot.slane %v2149, 4
    %v2151 = vadd.f32 %v2149, %v2150
    %v2152 = vrot.slane %v2151, 2
    %v2153 = vadd.f32 %v2151, %v2152
    %v2154 = vrot.slane %v2153, 1
    %v2155 = vadd.f32 %v2153, %v2154
    %v2156 = vadd.f32 %v2013, %v2014
    %v2157 = vadd.f32 %v2156, %v2015
    %v2158 = vadd.f32 %v2157, %v2016
    %v2159 = vadd.f32 %v2158, %v2017
    %v2160 = vadd.f32 %v2159, %v2018
    %v2161 = vadd.f32 %v2160, %v2019
    %v2162 = vadd.f32 %v2161, %v2020
    %v2163 = vadd.f32 %v2162, %v2021
    %v2164 = vadd.f32 %v2163, %v2022
    %v2165 = vadd.f32 %v2164, %v2023
    %v2166 = vadd.f32 %v2165, %v2024
    %v2167 = vadd.f32 %v2166, %v2025
    %v2168 = vadd.f32 %v2167, %v2026
    %v2169 = vadd.f32 %v2168, %v2027
    %v2170 = vadd.f32 %v2169, %v2028
    %v2171 = vrot.slane %v2170, 4
    %v2172 = vadd.f32 %v2170, %v2171
    %v2173 = vrot.slane %v2172, 2
    %v2174 = vadd.f32 %v2172, %v2173
    %v2175 = vrot.slane %v2174, 1
    %v2176 = vadd.f32 %v2174, %v2175
    %v2177 = vadd.f32 %v2029, %v2030
    %v2178 = vadd.f32 %v2177, %v2031
    %v2179 = vadd.f32 %v2178, %v2032
    %v2180 = vadd.f32 %v2179, %v2033
    %v2181 = vadd.f32 %v2180, %v2034
    %v2182 = vadd.f32 %v2181, %v2035
    %v2183 = vadd.f32 %v2182, %v2036
    %v2184 = vadd.f32 %v2183, %v2037
    %v2185 = vadd.f32 %v2184, %v2038
    %v2186 = vadd.f32 %v2185, %v2039
    %v2187 = vadd.f32 %v2186, %v2040
    %v2188 = vadd.f32 %v2187, %v2041
    %v2189 = vadd.f32 %v2188, %v2042
    %v2190 = vadd.f32 %v2189, %v2043
    %v2191 = vadd.f32 %v2190, %v2044
    %v2192 = vrot.slane %v2191, 4
    %v2193 = vadd.f32 %v2191, %v2192
    %v2194 = vrot.slane %v2193, 2
    %v2195 = vadd.f32 %v2193, %v2194
    %v2196 = vrot.slane %v2195, 1
    %v2197 = vadd.f32 %v2195, %v2196
    %v2198 = vadd.f32 %v2045, %v2046
    %v2199 = vadd.f32 %v2198, %v2047
    %v2200 = vadd.f32 %v2199, %v2048
    %v2201 = vadd.f32 %v2200, %v2049
    %v2202 = vadd.f32 %v2201, %v2050
    %v2203 = vadd.f32 %v2202, %v2051
    %v2204 = vadd.f32 %v2203, %v2052
    %v2205 = vadd.f32 %v2204, %v2053
    %v2206 = vadd.f32 %v2205, %v2054
    %v2207 = vadd.f32 %v2206, %v2055
    %v2208 = vadd.f32 %v2207, %v2056
    %v2209 = vadd.f32 %v2208, %v2057
    %v2210 = vadd.f32 %v2209, %v2058
    %v2211 = vadd.f32 %v2210, %v2059
    %v2212 = vadd.f32 %v2211, %v2060
    %v2213 = vrot.slane %v2212, 4
    %v2214 = vadd.f32 %v2212, %v2213
    %v2215 = vrot.slane %v2214, 2
    %v2216 = vadd.f32 %v2214, %v2215
    %v2217 = vrot.slane %v2216, 1
    %v2218 = vadd.f32 %v2216, %v2217
    %v2219 = vadd.f32 %v2061, %v2062
    %v2220 = vadd.f32 %v2219, %v2063
    %v2221 = vadd.f32 %v2220, %v2064
    %v2222 = vadd.f32 %v2221, %v2065
    %v2223 = vadd.f32 %v2222, %v2066
    %v2224 = vadd.f32 %v2223, %v2067
    %v2225 = vadd.f32 %v2224, %v2068
    %v2226 = vadd.f32 %v2225, %v2069
    %v2227 = vadd.f32 %v2226, %v2070
    %v2228 = vadd.f32 %v2227, %v2071
    %v2229 = vadd.f32 %v2228, %v2072
    %v2230 = vadd.f32 %v2229, %v2073
    %v2231 = vadd.f32 %v2230, %v2074
    %v2232 = vadd.f32 %v2231, %v2075
    %v2233 = vadd.f32 %v2232, %v2076
    %v2234 = vrot.slane %v2233, 4
    %v2235 = vadd.f32 %v2233, %v2234
    %v2236 = vrot.slane %v2235, 2
    %v2237 = vadd.f32 %v2235, %v2236
    %v2238 = vrot.slane %v2237, 1
    %v2239 = vadd.f32 %v2237, %v2238
    %v2240 = vadd.f32 %v2077, %v2078
    %v2241 = vadd.f32 %v2240, %v2079
    %v2242 = vadd.f32 %v2241, %v2080
    %v2243 = vadd.f32 %v2242, %v2081
    %v2244 = vadd.f32 %v2243, %v2082
    %v2245 = vadd.f32 %v2244, %v2083
    %v2246 = vadd.f32 %v2245, %v2084
    %v2247 = vadd.f32 %v2246, %v2085
    %v2248 = vadd.f32 %v2247, %v2086
    %v2249 = vadd.f32 %v2248, %v2087
    %v2250 = vadd.f32 %v2249, %v2088
    %v2251 = vadd.f32 %v2250, %v2089
    %v2252 = vadd.f32 %v2251, %v2090
    %v2253 = vadd.f32 %v2252, %v2091
    %v2254 = vadd.f32 %v2253, %v2092
    %v2255 = vrot.slane %v2254, 4
    %v2256 = vadd.f32 %v2254, %v2255
    %v2257 = vrot.slane %v2256, 2
    %v2258 = vadd.f32 %v2256, %v2257
    %v2259 = vrot.slane %v2258, 1
    %v2260 = vadd.f32 %v2258, %v2259
    %v2269 = vsel %vm1140, %v2134, %v2113
    %v2270 = vsel %vm1142, %v2155, %v2269
    %v2271 = vsel %vm1144, %v2176, %v2270
    %v2272 = vsel %vm1146, %v2197, %v2271
    %v2273 = vsel %vm1148, %v2218, %v2272
    %v2274 = vsel %vm1150, %v2239, %v2273
    %v2275 = vsel %vm1152, %v2260, %v2274
    %v2277 = vadd.f32 %v1188, %v2275
    %2278 = vst [vmem:[#allocation5] sm:$0xff] %v2277
    %2279 = vst.msk [vmem:[#allocation3] sm:$0xff] %vm1180, %v1163
    // Predicated region
    $region70: #{tpu_custom_call.1} parent=1 // pred_check
      %p2280 = pneg %p141
    $region71: #{tpu_custom_call.1} parent=1 // pred_check_branch
      %2282 = sbr.rel (%p2280) target = $region73
    $region72: #{tpu_custom_call.1} parent=1 // pred_region
      %v2283 = vld [vmem:[#allocation4] sm:$0xff]
      %v2284 = vrcp.pop %v2283
      %v2285 = vmul.f32 %v2283, %v2284
      %v2286 = vsub.f32 1.0, %v2285
      %v2287 = vmul.f32 %v2284, %v2286
      %v2288 = vadd.f32 %v2284, %v2287
      %vm2289 = vweird.f32 %v2283
      %vm2290 = vweird.f32 %v2284
      %vm2291 = vmor %vm2289, %vm2290
      %v2292 = vsel %vm2291, %v2284, %v2288
      %v2293 = vand.u32 2147483647, %v2283
      %vm2294 = vcmp.eq.f32.partialorder %v2293, 8.507059e+37
      %v2295 = vand.u32 %v2283, 2147483648
      %v2296 = vor.u32 1.1754944e-38, %v2295
      %v2297 = vsel %vm2294, %v2296, %v2292
      %v2298 = vld [vmem:[#allocation19] sm:$0xff]
      %v2299 = vld [vmem:[#allocation3] sm:$0xff]
      %2301 = vset.pattern.permute.xlu0 0
      %2302 = vperm.xlu0 %2301, %v2299
      %v2303 = vpop.permute.xlu0 %2302
      %v2305 = vsub.f32 %v2298, %v2303
      %v2306 = vmul.f32 %v2305, 1.442695
      %v2307 = vpow.pop %v2306
      %2309 = vset.pattern.permute.xlu0 0
      %2310 = vperm.xlu0 %2309, %v2297
      %v2311 = vpop.permute.xlu0 %2310
      %v2313 = vmul.f32 %v2307, %v2311
      %2314 = vst [vmem:[#allocation19] sm:$0xff] %v2313
      %v2315 = vld [vmem:[#allocation5] sm:$0xff]
      %v2316 = vmul.f32 %v2315, %v2311
      %v2317 = vld [vmem:[#allocation14] sm:$0xff]
      %v2318 = vld [vmem:[#allocation14 + $0x8] sm:$0xff]
      %v2319 = vld [vmem:[#allocation14 + $0x10] sm:$0xff]
      %v2320 = vld [vmem:[#allocation14 + $0x18] sm:$0xff]
      %v2321 = vld [vmem:[#allocation14 + $0x20] sm:$0xff]
      %v2322 = vld [vmem:[#allocation14 + $0x28] sm:$0xff]
      %v2323 = vld [vmem:[#allocation14 + $0x30] sm:$0xff]
      %v2324 = vld [vmem:[#allocation14 + $0x38] sm:$0xff]
      %v2325 = vld [vmem:[#allocation14 + $0x40] sm:$0xff]
      %v2326 = vld [vmem:[#allocation14 + $0x48] sm:$0xff]
      %v2327 = vld [vmem:[#allocation14 + $0x50] sm:$0xff]
      %v2328 = vld [vmem:[#allocation14 + $0x58] sm:$0xff]
      %v2329 = vld [vmem:[#allocation14 + $0x60] sm:$0xff]
      %v2330 = vld [vmem:[#allocation14 + $0x68] sm:$0xff]
      %v2331 = vld [vmem:[#allocation14 + $0x70] sm:$0xff]
      %v2332 = vld [vmem:[#allocation14 + $0x78] sm:$0xff]
      %v2333 = vld [vmem:[#allocation9] sm:$0xff]
      %v2334 = vld [vmem:[#allocation15] sm:$0xff]
      %v2335 = vld [vmem:[#allocation15 + $0x8] sm:$0xff]
      %v2336 = vld [vmem:[#allocation15 + $0x10] sm:$0xff]
      %v2337 = vld [vmem:[#allocation15 + $0x18] sm:$0xff]
      %v2338 = vld [vmem:[#allocation15 + $0x20] sm:$0xff]
      %v2339 = vld [vmem:[#allocation15 + $0x28] sm:$0xff]
      %v2340 = vld [vmem:[#allocation15 + $0x30] sm:$0xff]
      %v2341 = vld [vmem:[#allocation15 + $0x38] sm:$0xff]
      %v2342 = vld [vmem:[#allocation15 + $0x40] sm:$0xff]
      %v2343 = vld [vmem:[#allocation15 + $0x48] sm:$0xff]
      %v2344 = vld [vmem:[#allocation15 + $0x50] sm:$0xff]
      %v2345 = vld [vmem:[#allocation15 + $0x58] sm:$0xff]
      %v2346 = vld [vmem:[#allocation15 + $0x60] sm:$0xff]
      %v2347 = vld [vmem:[#allocation15 + $0x68] sm:$0xff]
      %v2348 = vld [vmem:[#allocation15 + $0x70] sm:$0xff]
      %v2349 = vld [vmem:[#allocation15 + $0x78] sm:$0xff]
      %2350 = vmatpush.msra.mxu0 %v2349
      %2351 = vmatpush.msra.mxu0 %v2348
      %2352 = vmatpush.msra.mxu0 %v2347
      %2353 = vmatpush.msra.mxu0 %v2346
      %2354 = vmatpush.msra.mxu0 %v2345
      %2355 = vmatpush.msra.mxu0 %v2344
      %2356 = vmatpush.msra.mxu0 %v2343
      %2357 = vmatpush.msra.mxu0 %v2342
      %2358 = vmatpush.msra.mxu0 %v2341
      %2359 = vmatpush.msra.mxu0 %v2340
      %2360 = vmatpush.msra.mxu0 %v2339
      %2361 = vmatpush.msra.mxu0 %v2338
      %2362 = vmatpush.msra.mxu0 %v2337
      %2363 = vmatpush.msra.mxu0 %v2336
      %2364 = vmatpush.msra.mxu0 %v2335
      %2365 = vmatpush.msra.mxu0 %v2334
      %2366 = vmatmul.f32.gmra.mxu0 %v2333
      %v2367 = vpop.f32.mrf.mxu0
      %v2368 = vadd.f32 0.0, %v2367
      %2369 = vdwg.mxu0
      %2370 = vmatpush.msra.mxu0 %v2332
      %2371 = vmatpush.msra.mxu0 %v2331
      %2372 = vmatpush.msra.mxu0 %v2330
      %2373 = vmatpush.msra.mxu0 %v2329
      %2374 = vmatpush.msra.mxu0 %v2328
      %2375 = vmatpush.msra.mxu0 %v2327
      %2376 = vmatpush.msra.mxu0 %v2326
      %2377 = vmatpush.msra.mxu0 %v2325
      %2378 = vmatpush.msra.mxu0 %v2324
      %2379 = vmatpush.msra.mxu0 %v2323
      %2380 = vmatpush.msra.mxu0 %v2322
      %2381 = vmatpush.msra.mxu0 %v2321
      %2382 = vmatpush.msra.mxu0 %v2320
      %2383 = vmatpush.msra.mxu0 %v2319
      %2384 = vmatpush.msra.mxu0 %v2318
      %2385 = vmatpush.msra.mxu0 %v2317
      %2386 = vmatmul.f32.gmra.mxu0 %v2316
      %v2387 = vpop.f32.mrf.mxu0
      %v2388 = vadd.f32 %v2368, %v2387
      %2389 = vdwg.mxu0
      %v2390 = vld [vmem:[#allocation11] sm:$0xff]
      %v2391 = vld [vmem:[#allocation17] sm:$0xff]
      %v2392 = vld [vmem:[#allocation17 + $0x8] sm:$0xff]
      %v2393 = vld [vmem:[#allocation17 + $0x10] sm:$0xff]
      %v2394 = vld [vmem:[#allocation17 + $0x18] sm:$0xff]
      %v2395 = vld [vmem:[#allocation17 + $0x20] sm:$0xff]
      %v2396 = vld [vmem:[#allocation17 + $0x28] sm:$0xff]
      %v2397 = vld [vmem:[#allocation17 + $0x30] sm:$0xff]
      %v2398 = vld [vmem:[#allocation17 + $0x38] sm:$0xff]
      %v2399 = vld [vmem:[#allocation17 + $0x40] sm:$0xff]
      %v2400 = vld [vmem:[#allocation17 + $0x48] sm:$0xff]
      %v2401 = vld [vmem:[#allocation17 + $0x50] sm:$0xff]
      %v2402 = vld [vmem:[#allocation17 + $0x58] sm:$0xff]
      %v2403 = vld [vmem:[#allocation17 + $0x60] sm:$0xff]
      %v2404 = vld [vmem:[#allocation17 + $0x68] sm:$0xff]
      %v2405 = vld [vmem:[#allocation17 + $0x70] sm:$0xff]
      %v2406 = vld [vmem:[#allocation17 + $0x78] sm:$0xff]
      %2407 = vmatpush.msra.mxu0 %v2406
      %2408 = vmatpush.msra.mxu0 %v2405
      %2409 = vmatpush.msra.mxu0 %v2404
      %2410 = vmatpush.msra.mxu0 %v2403
      %2411 = vmatpush.msra.mxu0 %v2402
      %2412 = vmatpush.msra.mxu0 %v2401
      %2413 = vmatpush.msra.mxu0 %v2400
      %2414 = vmatpush.msra.mxu0 %v2399
      %2415 = vmatpush.msra.mxu0 %v2398
      %2416 = vmatpush.msra.mxu0 %v2397
      %2417 = vmatpush.msra.mxu0 %v2396
      %2418 = vmatpush.msra.mxu0 %v2395
      %2419 = vmatpush.msra.mxu0 %v2394
      %2420 = vmatpush.msra.mxu0 %v2393
      %2421 = vmatpush.msra.mxu0 %v2392
      %2422 = vmatpush.msra.mxu0 %v2391
      %2423 = vmatmul.f32.gmra.mxu0 %v2390
      %v2424 = vpop.f32.mrf.mxu0
      %v2425 = vadd.f32 0.0, %v2424
      %2426 = vdwg.mxu0
      %v2427 = vadd.f32 %v2388, %v2425
      %v2428 = vld [vmem:[%s8] sm:$0x1]
      %v2430 = vperm.slane %v2428, 0
      %v2432 = vadd.f32 %v2427, %v2430
      %v2433 = vtanh.pop %v2432
      %2434 = vst [vmem:[#allocation18] sm:$0xff] %v2433
    $region73: #{tpu_custom_call.1} parent=1 // pred_fallthru
      _
    // Predicated region
    $region74: #{tpu_custom_call.1} parent=1 // pred_check
      _
    $region75: #{tpu_custom_call.1} parent=1 // pred_check_branch
      %2436 = sbr.rel (0) target = $region77
    $region76: #{tpu_custom_call.1} parent=1 // pred_region
      %2438 = vsyncadd [#allocation8], 0
      %s2440 = sshll.u32 [#allocation18], 4
      %s2441 = int_to_ptr.vmem [resolvable:$true] %s2440
      %s2442 = sshll.u32 %s9, 4
      %s2443 = int_to_ptr.hbm [resolvable:$true] %s2442
      %2445 = dma.vmem_to_hbm [thread:$0]  %s2441, 128, %s2443, [#allocation8]
    $region77: #{tpu_custom_call.1} parent=1 // pred_fallthru
      _
    // Predicated region
    $region78: #{tpu_custom_call.1} parent=1 // pred_check
      _
    $region79: #{tpu_custom_call.1} parent=1 // pred_check_branch
      %2447 = sbr.rel (0) target = $region81
    $region80: #{tpu_custom_call.1} parent=1 // pred_region
      %2449 = vsyncadd [#allocation20], 0
      %s2451 = sshll.u32 [#allocation19], 4
      %s2452 = int_to_ptr.vmem [resolvable:$true] %s2451
      %s2453 = sshll.u32 %s10, 4
      %s2454 = int_to_ptr.hbm [resolvable:$true] %s2453
      %2456 = dma.vmem_to_hbm [thread:$0]  %s2452, 128, %s2454, [#allocation20]
    $region81: #{tpu_custom_call.1} parent=1 // pred_fallthru
      _
    // Predicated region
    $region82: #{tpu_custom_call.1} parent=1 // pred_check
      _
    $region83: #{tpu_custom_call.1} parent=1 // pred_check_branch
      %2458 = sbr.rel (0) target = $region85
    $region84: #{tpu_custom_call.1} parent=1 // pred_region
      %2460 = dma.done [#allocation8], 128
    $region85: #{tpu_custom_call.1} parent=1 // pred_fallthru
      _
    // Predicated region
    $region86: #{tpu_custom_call.1} parent=1 // pred_check
      _
    $region87: #{tpu_custom_call.1} parent=1 // pred_check_branch
      %2462 = sbr.rel (0) target = $region89
    $region88: #{tpu_custom_call.1} parent=1 // pred_region
      %2464 = dma.done [#allocation20], 128
    $region89: #{tpu_custom_call.1} parent=1 // pred_fallthru
      _
    %2465 = vsyncpa [#allocation7], 1
    %2466 = vsyncpa [#allocation10], 1
    %2467 = vsyncpa [#allocation13], 1
    %2468 = vsyncpa [#allocation16], 1
    %2469 = vsyncpa [#allocation8], 1
    %2470 = vsyncpa [#allocation20], 1

</llo_original>
